<compile_context>
chip_gen: v5e
topology: v5e:2x2
jax: 0.10.0
libtpu: 0.0.40
codegen_flags: <defaults>
</compile_context>

<pallas_src>
import functools

import jax
import jax.numpy as jnp
from jax import lax
from jax.experimental import pallas as pl
from jax.experimental.pallas import tpu as pltpu

EPS = 1e-5
LANE = 128


def _round_up(n, m):
    return ((n + m - 1) // m) * m


def _pad_axis(a, axis, target):
    pads = [(0, 0)] * a.ndim
    pads[axis] = (0, target - a.shape[axis])
    return jnp.pad(a, pads)


def _mod(x, n):
    # n is a static Python int; power-of-two shapes (the ones exercised here)
    # use a plain VPU bitwise AND.
    if n & (n - 1) == 0:
        return jnp.bitwise_and(x, n - 1)
    return x % n


def _shift_rows(x, d, r):
    """result[i] = x[(i + d) % r] -- circular row shift via an XLU sublane roll."""
    return pltpu.roll(x, shift=(-d) % r, axis=0)


# ----------------------------------------------------------------------------
# Fused Pallas kernel
# ----------------------------------------------------------------------------
def _conv_block3_kernel(xs_ref, w1r_ref, s1_ref, b1_ref,
                        w2_ref, s2_ref, b2_ref,
                        w3_ref, s3_ref, b3_ref, br_ref,
                        o_ref, *, H2, W2):
    B, M, Cp = xs_ref.shape
    R = B * M
    F1p = s1_ref.shape[-1]
    F3p = s3_ref.shape[-1]
    cdt = w1r_ref.dtype                       # matmul operand dtype (f32 / bf16)

    xs = xs_ref[...].reshape(R, Cp)           # leading-dim merge: layout free

    # --- trunk stage 1 + residual: both stride-2 1x1 convs in ONE matmul ----
    t = jnp.dot(xs.astype(cdt), w1r_ref[...],
                preferred_element_type=jnp.float32)            # (R, F1p+F3p)
    y1 = jnp.maximum(t[:, :F1p] * s1_ref[...] + b1_ref[...], 0.0)
    res = t[:, F1p:] + br_ref[...]                             # shortcut (no BN)

    # --- trunk stage 2: 3x3 s1 p1 conv as 9 matmuls on roll-shifted rows ----
    # Column (+/-1) and row (+/-W2) shifts are sublane rolls of the flattened
    # slab; out-of-image positions are zeroed with iota masks.  No halo
    # scratch, no misaligned slices, no per-tap VMEM copies.
    ridx = lax.broadcasted_iota(jnp.int32, (R, 1), 0)
    w_in_row = _mod(ridx, W2)                  # column index inside the image
    r_in_img = _mod(ridx, H2 * W2)             # flattened index inside the image
    w_ok = {-1: w_in_row >= 1, 1: w_in_row <= W2 - 2}
    h_ok = {-1: r_in_img >= W2, 1: r_in_img < (H2 - 1) * W2}

    shifted = {0: y1.astype(cdt)}
    for dw in (-1, 1):
        rolled = _shift_rows(y1, dw, R)                        # y1[r + dw]
        shifted[dw] = jnp.where(w_ok[dw], rolled, 0.0).astype(cdt)

    acc = None                                 # f32 accumulator
    for kh in range(3):
        dh = kh - 1
        part = None                            # sum of this row's 3 kw taps
        for kw in range(3):
            contrib = jnp.dot(shifted[kw - 1], w2_ref[kh * 3 + kw],
                              preferred_element_type=jnp.float32)
            part = contrib if part is None else part + contrib
        if dh != 0:                            # shift the partial by one image row
            part = jnp.where(h_ok[dh], _shift_rows(part, dh * W2, R), 0.0)
        acc = part if acc is None else acc + part

    y2 = jnp.maximum(acc * s2_ref[...] + b2_ref[...], 0.0)     # (R, F2p)

    # --- trunk stage 3: 1x1 conv + BN, residual add, final ReLU -------------
    trunk = jnp.dot(y2.astype(cdt), w3_ref[...],
                    preferred_element_type=jnp.float32)        # (R, F3p)
    out = jnp.maximum(trunk * s3_ref[...] + b3_ref[...] + res, 0.0)
    o_ref[...] = out.reshape(B, M, F3p).astype(o_ref.dtype)


# ----------------------------------------------------------------------------
# pallas_call wrapper
# ----------------------------------------------------------------------------
def fused_conv_block(xs_flat, p, H2, W2, *, b_blk=1):
    N, M, Cp = xs_flat.shape
    assert N % b_blk == 0
    KF = p["w1r"].shape[1]                    # F1p + F3p
    F1p = p["s1"].shape[-1]
    F2p = p["s2"].shape[-1]
    F3p = p["s3"].shape[-1]

    kernel = functools.partial(_conv_block3_kernel, H2=H2, W2=W2)
    c2 = lambda n: (0, 0)
    c3 = lambda n: (0, 0, 0)

    # Generation-aware VMEM budget: ~100 MiB on v5e/v6e (128 MiB physical),
    # ~48 MiB on v7x (64 MiB physical).
    try:
        vmem_cap = pltpu.get_tpu_info().vmem_capacity_bytes
    except Exception:
        vmem_cap = 64 * 1024 * 1024
    vmem_limit = int(min(vmem_cap * 3 // 4, 100 * 1024 * 1024))

    return pl.pallas_call(
        kernel,
        out_shape=jax.ShapeDtypeStruct((N, M, F3p), jnp.float32),
        grid=(N // b_blk,),
        in_specs=[
            pl.BlockSpec((b_blk, M, Cp), lambda n: (n, 0, 0)),   # xs
            pl.BlockSpec((Cp, KF), c2),                          # [w1 | wr]
            pl.BlockSpec((1, F1p), c2),                          # s1
            pl.BlockSpec((1, F1p), c2),                          # b1
            pl.BlockSpec((9, F1p, F2p), c3),                     # w2 (9 taps)
            pl.BlockSpec((1, F2p), c2),                          # s2
            pl.BlockSpec((1, F2p), c2),                          # b2
            pl.BlockSpec((F2p, F3p), c2),                        # w3
            pl.BlockSpec((1, F3p), c2),                          # s3
            pl.BlockSpec((1, F3p), c2),                          # b3
            pl.BlockSpec((1, F3p), c2),                          # br (residual bias)
        ],
        out_specs=pl.BlockSpec((b_blk, M, F3p), lambda n: (n, 0, 0)),
        compiler_params=pltpu.CompilerParams(
            dimension_semantics=("parallel",),
            vmem_limit_bytes=vmem_limit,
        ),
    )(xs_flat, p["w1r"], p["s1"], p["b1"], p["w2"], p["s2"], p["b2"],
      p["w3"], p["s3"], p["b3"], p["br"])


# ----------------------------------------------------------------------------
# Glue: BN folding, lane-padded matmul-layout parameters
# ----------------------------------------------------------------------------
def fold_bn(gamma, beta, mean, var, conv_bias):
    scale = gamma / jnp.sqrt(var + EPS)
    bias = beta - mean * scale + conv_bias * scale
    return scale.reshape(1, -1), bias.reshape(1, -1)


def make_params(key, in_channels, filters, compute_dtype=jnp.float32):
    """Deterministic PyTorch-layout parameters -> padded matmul layout."""
    F1, F2, F3 = filters
    ks = jax.random.split(key, 16)
    raw = dict(
        w1=jax.random.normal(ks[0], (F1, in_channels, 1, 1), jnp.float32) * 0.2,
        b1=jax.random.normal(ks[1], (F1,), jnp.float32) * 0.1,
        w2=jax.random.normal(ks[2], (F2, F1, 3, 3), jnp.float32) * 0.1,
        b2=jax.random.normal(ks[3], (F2,), jnp.float32) * 0.1,
        w3=jax.random.normal(ks[4], (F3, F2, 1, 1), jnp.float32) * 0.2,
        b3=jax.random.normal(ks[5], (F3,), jnp.float32) * 0.1,
        wr=jax.random.normal(ks[6], (F3, in_channels, 1, 1), jnp.float32) * 0.2,
        br=jax.random.normal(ks[7], (F3,), jnp.float32) * 0.1,
        g1=1.0 + 0.1 * jax.random.normal(ks[8], (F1,), jnp.float32),
        be1=0.1 * jax.random.normal(ks[9], (F1,), jnp.float32),
        m1=0.1 * jax.random.normal(ks[10], (F1,), jnp.float32),
        v1=jnp.abs(jax.random.normal(ks[11], (F1,), jnp.float32)) + 0.5,
        g2=1.0 + 0.1 * jax.random.normal(ks[12], (F2,), jnp.float32),
        be2=0.1 * jax.random.normal(ks[13], (F2,), jnp.float32),
        m2=0.1 * jax.random.normal(ks[14], (F2,), jnp.float32),
        v2=jnp.abs(jax.random.normal(ks[15], (F2,), jnp.float32)) + 0.5,
    )
    ks2 = jax.random.split(jax.random.fold_in(key, 1), 4)
    raw.update(
        g3=1.0 + 0.1 * jax.random.normal(ks2[0], (F3,), jnp.float32),
        be3=0.1 * jax.random.normal(ks2[1], (F3,), jnp.float32),
        m3=0.1 * jax.random.normal(ks2[2], (F3,), jnp.float32),
        v3=jnp.abs(jax.random.normal(ks2[3], (F3,), jnp.float32)) + 0.5,
    )

    s1, b1 = fold_bn(raw["g1"], raw["be1"], raw["m1"], raw["v1"], raw["b1"])
    s2, b2 = fold_bn(raw["g2"], raw["be2"], raw["m2"], raw["v2"], raw["b2"])
    s3, b3 = fold_bn(raw["g3"], raw["be3"], raw["m3"], raw["v3"], raw["b3"])

    Cp = _round_up(in_channels, LANE)
    F1p, F2p, F3p = (_round_up(f, LANE) for f in (F1, F2, F3))

    # matmul-layout weights, zero-padded to lane-dense shapes
    w1 = _pad_axis(_pad_axis(raw["w1"].reshape(F1, in_channels).T, 0, Cp), 1, F1p)
    wr = _pad_axis(_pad_axis(raw["wr"].reshape(F3, in_channels).T, 0, Cp), 1, F3p)
    w1r = jnp.concatenate([w1, wr], axis=1)                 # fused (Cp, F1p+F3p)
    w2 = jnp.transpose(raw["w2"], (2, 3, 1, 0)).reshape(9, F1, F2)
    w2 = _pad_axis(_pad_axis(w2, 1, F1p), 2, F2p)
    w3 = _pad_axis(_pad_axis(raw["w3"].reshape(F3, F2).T, 0, F2p), 1, F3p)

    params = dict(
        w1r=w1r.astype(compute_dtype),
        w2=w2.astype(compute_dtype),
        w3=w3.astype(compute_dtype),
        s1=_pad_axis(s1, 1, F1p), b1=_pad_axis(b1, 1, F1p),
        s2=_pad_axis(s2, 1, F2p), b2=_pad_axis(b2, 1, F2p),
        s3=_pad_axis(s3, 1, F3p), b3=_pad_axis(b3, 1, F3p),
        br=_pad_axis(raw["br"].reshape(1, -1), 1, F3p),
        F3=F3,
    )
    return params, raw


def conv_block3_forward(x_nchw, params, *, b_blk=1):
    # one layout pass at entry: NCHW -> NHWC, stride-2 sample, lane-pad Cin
    x = jnp.transpose(x_nchw, (0, 2, 3, 1))
    xs = x[:, ::2, ::2, :]                       # (N, H2, W2, Cin)
    N, H2, W2, Cin = xs.shape
    Cp = params["w1r"].shape[0]
    xs = jnp.pad(xs, ((0, 0), (0, 0), (0, 0), (0, Cp - Cin)))
    xs_flat = xs.reshape(N, H2 * W2, Cp)

    out = fused_conv_block(xs_flat, params, H2, W2, b_blk=b_blk)

    F3 = params["F3"]
    out = out[:, :, :F3].reshape(N, H2, W2, F3)
    return jnp.transpose(out, (0, 3, 1, 2))      # back to NCHW


# ----------------------------------------------------------------------------
# Pure-JAX reference (eval-mode BN) for correctness check
# ----------------------------------------------------------------------------
def ref_forward(x_nchw, raw):
    dn = ("NCHW", "OIHW", "NCHW")

    def conv(x, w, b, stride, pad):
        y = jax.lax.conv_general_dilated(
            x, w, (stride, stride), [(pad, pad), (pad, pad)],
            dimension_numbers=dn)
        return y + b.reshape(1, -1, 1, 1)

    def bn(x, g, be, m, v):
        r = lambda a: a.reshape(1, -1, 1, 1)
        return (x - r(m)) / jnp.sqrt(r(v) + EPS) * r(g) + r(be)

    t = conv(x_nchw, raw["w1"], raw["b1"], 2, 0)
    t = jax.nn.relu(bn(t, raw["g1"], raw["be1"], raw["m1"], raw["v1"]))
    t = conv(t, raw["w2"], raw["b2"], 1, 1)
    t = jax.nn.relu(bn(t, raw["g2"], raw["be2"], raw["m2"], raw["v2"]))
    t = conv(t, raw["w3"], raw["b3"], 1, 0)
    t = bn(t, raw["g3"], raw["be3"], raw["m3"], raw["v3"])
    r = conv(x_nchw, raw["wr"], raw["br"], 2, 0)
    return jax.nn.relu(t + r)


# ----------------------------------------------------------------------------
if __name__ == "__main__":
    key = jax.random.PRNGKey(0)
    N, Cin, H, W = 2, 4, 16, 16
    filters = (8, 8, 16)

    kx, kp = jax.random.split(key)
    x = jax.random.normal(kx, (N, Cin, H, W), jnp.float32)
    # compute_dtype=jnp.float32 keeps the 1e-4 check; use jnp.bfloat16 on
    # v6e/v7x for full MXU rate (accumulation stays f32).
    params, raw = make_params(kp, Cin, filters, compute_dtype=jnp.float32)

    out = jax.block_until_ready(conv_block3_forward(x, params))
    ref = jax.block_until_ready(ref_forward(x, raw))

    assert out.shape == (N, filters[2], H // 2, W // 2), out.shape
    assert jnp.allclose(out, ref, atol=1e-4, rtol=1e-4), \
        f"max err {jnp.max(jnp.abs(out - ref))}"

    print("KERNEL_OK")
</pallas_src>

<mosaic_0001>
module attributes {stable_mosaic.version = 11 : i64} {
  func.func @_conv_block3_kernel(%arg0: i32, %arg1: memref<1x64x128xf32, #tpu.memory_space<vmem>>, %arg2: memref<128x256xf32, #tpu.memory_space<vmem>>, %arg3: memref<1x128xf32, #tpu.memory_space<vmem>>, %arg4: memref<1x128xf32, #tpu.memory_space<vmem>>, %arg5: memref<9x128x128xf32, #tpu.memory_space<vmem>>, %arg6: memref<1x128xf32, #tpu.memory_space<vmem>>, %arg7: memref<1x128xf32, #tpu.memory_space<vmem>>, %arg8: memref<128x128xf32, #tpu.memory_space<vmem>>, %arg9: memref<1x128xf32, #tpu.memory_space<vmem>>, %arg10: memref<1x128xf32, #tpu.memory_space<vmem>>, %arg11: memref<1x128xf32, #tpu.memory_space<vmem>>, %arg12: memref<1x64x128xf32, #tpu.memory_space<vmem>>) attributes {dimension_semantics = [#tpu.dimension_semantics<parallel>], iteration_bounds = array<i64: 2>, scalar_prefetch = 0 : i64, scratch_operands = 0 : i64, tpu.core_type = #tpu.core_type<tc>, window_params = [{transform_indices = @transform_0, window_bounds = array<i64: 1, 64, 128>}, {pipeline_mode = #tpu.pipeline_mode<synchronous>, transform_indices = @transform_1, window_bounds = array<i64: 128, 256>}, {pipeline_mode = #tpu.pipeline_mode<synchronous>, transform_indices = @transform_2, window_bounds = array<i64: 1, 128>}, {pipeline_mode = #tpu.pipeline_mode<synchronous>, transform_indices = @transform_3, window_bounds = array<i64: 1, 128>}, {pipeline_mode = #tpu.pipeline_mode<synchronous>, transform_indices = @transform_4, window_bounds = array<i64: 9, 128, 128>}, {pipeline_mode = #tpu.pipeline_mode<synchronous>, transform_indices = @transform_5, window_bounds = array<i64: 1, 128>}, {pipeline_mode = #tpu.pipeline_mode<synchronous>, transform_indices = @transform_6, window_bounds = array<i64: 1, 128>}, {pipeline_mode = #tpu.pipeline_mode<synchronous>, transform_indices = @transform_7, window_bounds = array<i64: 128, 128>}, {pipeline_mode = #tpu.pipeline_mode<synchronous>, transform_indices = @transform_8, window_bounds = array<i64: 1, 128>}, {pipeline_mode = #tpu.pipeline_mode<synchronous>, transform_indices = @transform_9, window_bounds = array<i64: 1, 128>}, {pipeline_mode = #tpu.pipeline_mode<synchronous>, transform_indices = @transform_10, window_bounds = array<i64: 1, 128>}, {transform_indices = @transform_11, window_bounds = array<i64: 1, 64, 128>}]} {
    %c0 = arith.constant 0 : index
    %c0_0 = arith.constant 0 : index
    %c0_1 = arith.constant 0 : index
    %0 = vector.load %arg1[%c0, %c0_0, %c0_1] : memref<1x64x128xf32, #tpu.memory_space<vmem>>, vector<1x64x128xf32>
    %1 = vector.shape_cast %0 : vector<1x64x128xf32> to vector<64x128xf32>
    %c0_2 = arith.constant 0 : index
    %c0_3 = arith.constant 0 : index
    %2 = vector.load %arg2[%c0_2, %c0_3] : memref<128x256xf32, #tpu.memory_space<vmem>>, vector<128x256xf32>
    %cst = arith.constant dense<0.000000e+00> : vector<64x256xf32>
    %3 = tpu.matmul %1, %2, %cst {dimension_numbers = #tpu.dot_dimension_numbers<[1], [0], [0], [1], [0, 0, 1, 1], [], []>} : vector<64x128xf32>, vector<128x256xf32>, vector<64x256xf32> -> vector<64x256xf32>
    %4 = vector.extract_strided_slice %3 {offsets = [0, 0], sizes = [64, 128], strides = [1, 1]} : vector<64x256xf32> to vector<64x128xf32>
    %c0_4 = arith.constant 0 : index
    %c0_5 = arith.constant 0 : index
    %5 = vector.load %arg3[%c0_4, %c0_5] : memref<1x128xf32, #tpu.memory_space<vmem>>, vector<1x128xf32>
    %6 = vector.broadcast %5 : vector<1x128xf32> to vector<64x128xf32>
    %7 = arith.mulf %4, %6 : vector<64x128xf32>
    %c0_6 = arith.constant 0 : index
    %c0_7 = arith.constant 0 : index
    %8 = vector.load %arg4[%c0_6, %c0_7] : memref<1x128xf32, #tpu.memory_space<vmem>>, vector<1x128xf32>
    %9 = vector.broadcast %8 : vector<1x128xf32> to vector<64x128xf32>
    %10 = arith.addf %7, %9 : vector<64x128xf32>
    %cst_8 = arith.constant 0.000000e+00 : f32
    %11 = vector.broadcast %cst_8 : f32 to vector<64x128xf32>
    %12 = arith.maximumf %10, %11 : vector<64x128xf32>
    %13 = vector.extract_strided_slice %3 {offsets = [0, 128], sizes = [64, 128], strides = [1, 1]} : vector<64x256xf32> to vector<64x128xf32>
    %c0_9 = arith.constant 0 : index
    %c0_10 = arith.constant 0 : index
    %14 = vector.load %arg11[%c0_9, %c0_10] : memref<1x128xf32, #tpu.memory_space<vmem>>, vector<1x128xf32>
    %15 = vector.broadcast %14 : vector<1x128xf32> to vector<64x128xf32>
    %16 = arith.addf %13, %15 : vector<64x128xf32>
    %17 = tpu.iota {dimensions = array<i32: 0>} : vector<64x1xi32>
    %c7_i32 = arith.constant 7 : i32
    %18 = vector.broadcast %c7_i32 : i32 to vector<64x1xi32>
    %19 = arith.andi %17, %18 : vector<64x1xi32>
    %c63_i32 = arith.constant 63 : i32
    %20 = vector.broadcast %c63_i32 : i32 to vector<64x1xi32>
    %21 = arith.andi %17, %20 : vector<64x1xi32>
    %c1_i32 = arith.constant 1 : i32
    %22 = vector.broadcast %c1_i32 : i32 to vector<64x1xi32>
    %23 = arith.cmpi sge, %19, %22 : vector<64x1xi32>
    %c6_i32 = arith.constant 6 : i32
    %24 = vector.broadcast %c6_i32 : i32 to vector<64x1xi32>
    %25 = arith.cmpi sle, %19, %24 : vector<64x1xi32>
    %c8_i32 = arith.constant 8 : i32
    %26 = vector.broadcast %c8_i32 : i32 to vector<64x1xi32>
    %27 = arith.cmpi sge, %21, %26 : vector<64x1xi32>
    %c56_i32 = arith.constant 56 : i32
    %28 = vector.broadcast %c56_i32 : i32 to vector<64x1xi32>
    %29 = arith.cmpi slt, %21, %28 : vector<64x1xi32>
    %c1_i32_11 = arith.constant 1 : i32
    %30 = tpu.dynamic_rotate %12 by %c1_i32_11 dim 0 : vector<64x128xf32>, i32 -> vector<64x128xf32>
    %cst_12 = arith.constant 0.000000e+00 : f32
    %31 = vector.shape_cast %23 : vector<64x1xi1> to vector<64x1xi1>
    %32 = vector.broadcast %31 : vector<64x1xi1> to vector<64x128xi1>
    %33 = vector.broadcast %cst_12 : f32 to vector<64x128xf32>
    %34 = arith.select %32, %30, %33 : vector<64x128xi1>, vector<64x128xf32>
    %c63_i32_13 = arith.constant 63 : i32
    %35 = tpu.dynamic_rotate %12 by %c63_i32_13 dim 0 : vector<64x128xf32>, i32 -> vector<64x128xf32>
    %cst_14 = arith.constant 0.000000e+00 : f32
    %36 = vector.shape_cast %25 : vector<64x1xi1> to vector<64x1xi1>
    %37 = vector.broadcast %36 : vector<64x1xi1> to vector<64x128xi1>
    %38 = vector.broadcast %cst_14 : f32 to vector<64x128xf32>
    %39 = arith.select %37, %35, %38 : vector<64x128xi1>, vector<64x128xf32>
    %c0_15 = arith.constant 0 : index
    %c0_16 = arith.constant 0 : index
    %c0_17 = arith.constant 0 : index
    %40 = vector.load %arg5[%c0_15, %c0_16, %c0_17] : memref<9x128x128xf32, #tpu.memory_space<vmem>>, vector<1x128x128xf32>
    %41 = vector.shape_cast %40 : vector<1x128x128xf32> to vector<128x128xf32>
    %cst_18 = arith.constant dense<0.000000e+00> : vector<64x128xf32>
    %42 = tpu.matmul %34, %41, %cst_18 {dimension_numbers = #tpu.dot_dimension_numbers<[1], [0], [0], [1], [0, 0, 1, 1], [], []>} : vector<64x128xf32>, vector<128x128xf32>, vector<64x128xf32> -> vector<64x128xf32>
    %c1 = arith.constant 1 : index
    %c0_19 = arith.constant 0 : index
    %c0_20 = arith.constant 0 : index
    %43 = vector.load %arg5[%c1, %c0_19, %c0_20] : memref<9x128x128xf32, #tpu.memory_space<vmem>>, vector<1x128x128xf32>
    %44 = vector.shape_cast %43 : vector<1x128x128xf32> to vector<128x128xf32>
    %cst_21 = arith.constant dense<0.000000e+00> : vector<64x128xf32>
    %45 = tpu.matmul %12, %44, %cst_21 {dimension_numbers = #tpu.dot_dimension_numbers<[1], [0], [0], [1], [0, 0, 1, 1], [], []>} : vector<64x128xf32>, vector<128x128xf32>, vector<64x128xf32> -> vector<64x128xf32>
    %46 = arith.addf %42, %45 : vector<64x128xf32>
    %c2 = arith.constant 2 : index
    %c0_22 = arith.constant 0 : index
    %c0_23 = arith.constant 0 : index
    %47 = vector.load %arg5[%c2, %c0_22, %c0_23] : memref<9x128x128xf32, #tpu.memory_space<vmem>>, vector<1x128x128xf32>
    %48 = vector.shape_cast %47 : vector<1x128x128xf32> to vector<128x128xf32>
    %cst_24 = arith.constant dense<0.000000e+00> : vector<64x128xf32>
    %49 = tpu.matmul %39, %48, %cst_24 {dimension_numbers = #tpu.dot_dimension_numbers<[1], [0], [0], [1], [0, 0, 1, 1], [], []>} : vector<64x128xf32>, vector<128x128xf32>, vector<64x128xf32> -> vector<64x128xf32>
    %50 = arith.addf %46, %49 : vector<64x128xf32>
    %c8_i32_25 = arith.constant 8 : i32
    %51 = tpu.dynamic_rotate %50 by %c8_i32_25 dim 0 : vector<64x128xf32>, i32 -> vector<64x128xf32>
    %cst_26 = arith.constant 0.000000e+00 : f32
    %52 = vector.shape_cast %27 : vector<64x1xi1> to vector<64x1xi1>
    %53 = vector.broadcast %52 : vector<64x1xi1> to vector<64x128xi1>
    %54 = vector.broadcast %cst_26 : f32 to vector<64x128xf32>
    %55 = arith.select %53, %51, %54 : vector<64x128xi1>, vector<64x128xf32>
    %c3 = arith.constant 3 : index
    %c0_27 = arith.constant 0 : index
    %c0_28 = arith.constant 0 : index
    %56 = vector.load %arg5[%c3, %c0_27, %c0_28] : memref<9x128x128xf32, #tpu.memory_space<vmem>>, vector<1x128x128xf32>
    %57 = vector.shape_cast %56 : vector<1x128x128xf32> to vector<128x128xf32>
    %cst_29 = arith.constant dense<0.000000e+00> : vector<64x128xf32>
    %58 = tpu.matmul %34, %57, %cst_29 {dimension_numbers = #tpu.dot_dimension_numbers<[1], [0], [0], [1], [0, 0, 1, 1], [], []>} : vector<64x128xf32>, vector<128x128xf32>, vector<64x128xf32> -> vector<64x128xf32>
    %c4 = arith.constant 4 : index
    %c0_30 = arith.constant 0 : index
    %c0_31 = arith.constant 0 : index
    %59 = vector.load %arg5[%c4, %c0_30, %c0_31] : memref<9x128x128xf32, #tpu.memory_space<vmem>>, vector<1x128x128xf32>
    %60 = vector.shape_cast %59 : vector<1x128x128xf32> to vector<128x128xf32>
    %cst_32 = arith.constant dense<0.000000e+00> : vector<64x128xf32>
    %61 = tpu.matmul %12, %60, %cst_32 {dimension_numbers = #tpu.dot_dimension_numbers<[1], [0], [0], [1], [0, 0, 1, 1], [], []>} : vector<64x128xf32>, vector<128x128xf32>, vector<64x128xf32> -> vector<64x128xf32>
    %62 = arith.addf %58, %61 : vector<64x128xf32>
    %c5 = arith.constant 5 : index
    %c0_33 = arith.constant 0 : index
    %c0_34 = arith.constant 0 : index
    %63 = vector.load %arg5[%c5, %c0_33, %c0_34] : memref<9x128x128xf32, #tpu.memory_space<vmem>>, vector<1x128x128xf32>
    %64 = vector.shape_cast %63 : vector<1x128x128xf32> to vector<128x128xf32>
    %cst_35 = arith.constant dense<0.000000e+00> : vector<64x128xf32>
    %65 = tpu.matmul %39, %64, %cst_35 {dimension_numbers = #tpu.dot_dimension_numbers<[1], [0], [0], [1], [0, 0, 1, 1], [], []>} : vector<64x128xf32>, vector<128x128xf32>, vector<64x128xf32> -> vector<64x128xf32>
    %66 = arith.addf %62, %65 : vector<64x128xf32>
    %67 = arith.addf %55, %66 : vector<64x128xf32>
    %c6 = arith.constant 6 : index
    %c0_36 = arith.constant 0 : index
    %c0_37 = arith.constant 0 : index
    %68 = vector.load %arg5[%c6, %c0_36, %c0_37] : memref<9x128x128xf32, #tpu.memory_space<vmem>>, vector<1x128x128xf32>
    %69 = vector.shape_cast %68 : vector<1x128x128xf32> to vector<128x128xf32>
    %cst_38 = arith.constant dense<0.000000e+00> : vector<64x128xf32>
    %70 = tpu.matmul %34, %69, %cst_38 {dimension_numbers = #tpu.dot_dimension_numbers<[1], [0], [0], [1], [0, 0, 1, 1], [], []>} : vector<64x128xf32>, vector<128x128xf32>, vector<64x128xf32> -> vector<64x128xf32>
    %c7 = arith.constant 7 : index
    %c0_39 = arith.constant 0 : index
    %c0_40 = arith.constant 0 : index
    %71 = vector.load %arg5[%c7, %c0_39, %c0_40] : memref<9x128x128xf32, #tpu.memory_space<vmem>>, vector<1x128x128xf32>
    %72 = vector.shape_cast %71 : vector<1x128x128xf32> to vector<128x128xf32>
    %cst_41 = arith.constant dense<0.000000e+00> : vector<64x128xf32>
    %73 = tpu.matmul %12, %72, %cst_41 {dimension_numbers = #tpu.dot_dimension_numbers<[1], [0], [0], [1], [0, 0, 1, 1], [], []>} : vector<64x128xf32>, vector<128x128xf32>, vector<64x128xf32> -> vector<64x128xf32>
    %74 = arith.addf %70, %73 : vector<64x128xf32>
    %c8 = arith.constant 8 : index
    %c0_42 = arith.constant 0 : index
    %c0_43 = arith.constant 0 : index
    %75 = vector.load %arg5[%c8, %c0_42, %c0_43] : memref<9x128x128xf32, #tpu.memory_space<vmem>>, vector<1x128x128xf32>
    %76 = vector.shape_cast %75 : vector<1x128x128xf32> to vector<128x128xf32>
    %cst_44 = arith.constant dense<0.000000e+00> : vector<64x128xf32>
    %77 = tpu.matmul %39, %76, %cst_44 {dimension_numbers = #tpu.dot_dimension_numbers<[1], [0], [0], [1], [0, 0, 1, 1], [], []>} : vector<64x128xf32>, vector<128x128xf32>, vector<64x128xf32> -> vector<64x128xf32>
    %78 = arith.addf %74, %77 : vector<64x128xf32>
    %c56_i32_45 = arith.constant 56 : i32
    %79 = tpu.dynamic_rotate %78 by %c56_i32_45 dim 0 : vector<64x128xf32>, i32 -> vector<64x128xf32>
    %cst_46 = arith.constant 0.000000e+00 : f32
    %80 = vector.shape_cast %29 : vector<64x1xi1> to vector<64x1xi1>
    %81 = vector.broadcast %80 : vector<64x1xi1> to vector<64x128xi1>
    %82 = vector.broadcast %cst_46 : f32 to vector<64x128xf32>
    %83 = arith.select %81, %79, %82 : vector<64x128xi1>, vector<64x128xf32>
    %84 = arith.addf %67, %83 : vector<64x128xf32>
    %c0_47 = arith.constant 0 : index
    %c0_48 = arith.constant 0 : index
    %85 = vector.load %arg6[%c0_47, %c0_48] : memref<1x128xf32, #tpu.memory_space<vmem>>, vector<1x128xf32>
    %86 = vector.broadcast %85 : vector<1x128xf32> to vector<64x128xf32>
    %87 = arith.mulf %84, %86 : vector<64x128xf32>
    %c0_49 = arith.constant 0 : index
    %c0_50 = arith.constant 0 : index
    %88 = vector.load %arg7[%c0_49, %c0_50] : memref<1x128xf32, #tpu.memory_space<vmem>>, vector<1x128xf32>
    %89 = vector.broadcast %88 : vector<1x128xf32> to vector<64x128xf32>
    %90 = arith.addf %87, %89 : vector<64x128xf32>
    %cst_51 = arith.constant 0.000000e+00 : f32
    %91 = vector.broadcast %cst_51 : f32 to vector<64x128xf32>
    %92 = arith.maximumf %90, %91 : vector<64x128xf32>
    %c0_52 = arith.constant 0 : index
    %c0_53 = arith.constant 0 : index
    %93 = vector.load %arg8[%c0_52, %c0_53] : memref<128x128xf32, #tpu.memory_space<vmem>>, vector<128x128xf32>
    %cst_54 = arith.constant dense<0.000000e+00> : vector<64x128xf32>
    %94 = tpu.matmul %92, %93, %cst_54 {dimension_numbers = #tpu.dot_dimension_numbers<[1], [0], [0], [1], [0, 0, 1, 1], [], []>} : vector<64x128xf32>, vector<128x128xf32>, vector<64x128xf32> -> vector<64x128xf32>
    %c0_55 = arith.constant 0 : index
    %c0_56 = arith.constant 0 : index
    %95 = vector.load %arg9[%c0_55, %c0_56] : memref<1x128xf32, #tpu.memory_space<vmem>>, vector<1x128xf32>
    %96 = vector.broadcast %95 : vector<1x128xf32> to vector<64x128xf32>
    %97 = arith.mulf %94, %96 : vector<64x128xf32>
    %c0_57 = arith.constant 0 : index
    %c0_58 = arith.constant 0 : index
    %98 = vector.load %arg10[%c0_57, %c0_58] : memref<1x128xf32, #tpu.memory_space<vmem>>, vector<1x128xf32>
    %99 = vector.broadcast %98 : vector<1x128xf32> to vector<64x128xf32>
    %100 = arith.addf %97, %99 : vector<64x128xf32>
    %101 = arith.addf %100, %16 : vector<64x128xf32>
    %cst_59 = arith.constant 0.000000e+00 : f32
    %102 = vector.broadcast %cst_59 : f32 to vector<64x128xf32>
    %103 = arith.maximumf %101, %102 : vector<64x128xf32>
    %104 = vector.shape_cast %103 : vector<64x128xf32> to vector<1x64x128xf32>
    %c0_60 = arith.constant 0 : index
    %c0_61 = arith.constant 0 : index
    %c0_62 = arith.constant 0 : index
    %105 = vector.load %arg12[%c0_60, %c0_61, %c0_62] : memref<1x64x128xf32, #tpu.memory_space<vmem>>, vector<1x64x128xf32>
    tpu.vector_store %arg12[%c0_60, %c0_61, %c0_62], %104 {strides = array<i32>} : memref<1x64x128xf32, #tpu.memory_space<vmem>>, vector<1x64x128xf32>,
    return
  }
  func.func @transform_0(%arg0: i32) -> (i32, i32, i32) {
    %c0_i32 = arith.constant 0 : i32
    %c0_i32_0 = arith.constant 0 : i32
    %c0_i32_1 = arith.constant 0 : i32
    return %arg0, %c0_i32, %c0_i32_0 : i32, i32, i32
  }
  func.func @transform_1(%arg0: i32) -> (i32, i32) {
    %c0_i32 = arith.constant 0 : i32
    %c0_i32_0 = arith.constant 0 : i32
    %c0_i32_1 = arith.constant 0 : i32
    return %c0_i32, %c0_i32_0 : i32, i32
  }
  func.func @transform_2(%arg0: i32) -> (i32, i32) {
    %c0_i32 = arith.constant 0 : i32
    %c0_i32_0 = arith.constant 0 : i32
    %c0_i32_1 = arith.constant 0 : i32
    return %c0_i32, %c0_i32_0 : i32, i32
  }
  func.func @transform_3(%arg0: i32) -> (i32, i32) {
    %c0_i32 = arith.constant 0 : i32
    %c0_i32_0 = arith.constant 0 : i32
    %c0_i32_1 = arith.constant 0 : i32
    return %c0_i32, %c0_i32_0 : i32, i32
  }
  func.func @transform_4(%arg0: i32) -> (i32, i32, i32) {
    %c0_i32 = arith.constant 0 : i32
    %c0_i32_0 = arith.constant 0 : i32
    %c0_i32_1 = arith.constant 0 : i32
    %c0_i32_2 = arith.constant 0 : i32
    return %c0_i32, %c0_i32_0, %c0_i32_1 : i32, i32, i32
  }
  func.func @transform_5(%arg0: i32) -> (i32, i32) {
    %c0_i32 = arith.constant 0 : i32
    %c0_i32_0 = arith.constant 0 : i32
    %c0_i32_1 = arith.constant 0 : i32
    return %c0_i32, %c0_i32_0 : i32, i32
  }
  func.func @transform_6(%arg0: i32) -> (i32, i32) {
    %c0_i32 = arith.constant 0 : i32
    %c0_i32_0 = arith.constant 0 : i32
    %c0_i32_1 = arith.constant 0 : i32
    return %c0_i32, %c0_i32_0 : i32, i32
  }
  func.func @transform_7(%arg0: i32) -> (i32, i32) {
    %c0_i32 = arith.constant 0 : i32
    %c0_i32_0 = arith.constant 0 : i32
    %c0_i32_1 = arith.constant 0 : i32
    return %c0_i32, %c0_i32_0 : i32, i32
  }
  func.func @transform_8(%arg0: i32) -> (i32, i32) {
    %c0_i32 = arith.constant 0 : i32
    %c0_i32_0 = arith.constant 0 : i32
    %c0_i32_1 = arith.constant 0 : i32
    return %c0_i32, %c0_i32_0 : i32, i32
  }
  func.func @transform_9(%arg0: i32) -> (i32, i32) {
    %c0_i32 = arith.constant 0 : i32
    %c0_i32_0 = arith.constant 0 : i32
    %c0_i32_1 = arith.constant 0 : i32
    return %c0_i32, %c0_i32_0 : i32, i32
  }
  func.func @transform_10(%arg0: i32) -> (i32, i32) {
    %c0_i32 = arith.constant 0 : i32
    %c0_i32_0 = arith.constant 0 : i32
    %c0_i32_1 = arith.constant 0 : i32
    return %c0_i32, %c0_i32_0 : i32, i32
  }
  func.func @transform_11(%arg0: i32) -> (i32, i32, i32) {
    %c0_i32 = arith.constant 0 : i32
    %c0_i32_0 = arith.constant 0 : i32
    %c0_i32_1 = arith.constant 0 : i32
    return %arg0, %c0_i32, %c0_i32_0 : i32, i32, i32
  }
}

</mosaic_0001>

<llo_original>
// kernel: tpu_custom_call.1
$region0: #{tpu_custom_call.1}
  #allocation0 [shape = 'u32[]', space=smem, size = 0x4, offset = 0x4, fixed_abs, tag = 'smem constant byte address 0x4 - core index']
  #allocation1 [shape = 'u32[72,128]{1,0:T(1,128)}', space=vmem, size = 0x9000, scoped, tag = 'internal scratch']
  %s0 = inlined_call_operand.hbm [shape: f32[2,64,128], index: 0, kind: input, shape index: {}]
  %s1 = inlined_call_operand.hbm [shape: f32[128,256], index: 1, kind: input, shape index: {}]
  %s2 = inlined_call_operand.vmem [shape: f32[1,128], index: 2, kind: input, shape index: {}]
  %s3 = inlined_call_operand.vmem [shape: f32[1,128], index: 3, kind: input, shape index: {}]
  %s4 = inlined_call_operand.hbm [shape: f32[9,128,128], index: 4, kind: input, shape index: {}]
  %s5 = inlined_call_operand.vmem [shape: f32[1,128], index: 5, kind: input, shape index: {}]
  %s6 = inlined_call_operand.vmem [shape: f32[1,128], index: 6, kind: input, shape index: {}]
  %s7 = inlined_call_operand.hbm [shape: f32[128,128], index: 7, kind: input, shape index: {}]
  %s8 = inlined_call_operand.vmem [shape: f32[1,128], index: 8, kind: input, shape index: {}]
  %s9 = inlined_call_operand.vmem [shape: f32[1,128], index: 9, kind: input, shape index: {}]
  %s10 = inlined_call_operand.vmem [shape: f32[1,128], index: 10, kind: input, shape index: {}]
  %s11 = inlined_call_operand.hbm [shape: f32[2,64,128], index: 11, kind: output, shape index: {}]
  %s12 = sld [smem:[#allocation0]]
  $region93: #{tpu_custom_call.1} parent=0
    _
  %s14 = ssub.s32 1, %s12
  %s15 = scalar_select 0, %s14, %s12
  $region1: #{tpu_custom_call.1} parent=0
    #allocation2 [shape = 'u8[65536]{0}', space=vmem, size = 0x10000, scoped, tag = 'input window, operand 0']
    #allocation3 [shape = 's32[2]{0}', space=sflag, size = 0x8, scoped, tag = 'scoped memory for tpu_custom_call.1']
    #allocation4 [shape = 's32[2]{0}', space=sflag, size = 0x8, scoped, tag = 'scoped memory for tpu_custom_call.1']
    #allocation5 [shape = 'u8[131072]{0}', space=vmem, size = 0x20000, scoped, tag = 'input window, operand 1, single buffered']
    #allocation6 [shape = 's32[1]{0}', space=sflag, size = 0x4, scoped, tag = 'scoped memory for tpu_custom_call.1']
    #allocation7 [shape = 'u8[589824]{0}', space=vmem, size = 0x90000, scoped, tag = 'input window, operand 4, single buffered']
    #allocation8 [shape = 'u8[65536]{0}', space=vmem, size = 0x10000, scoped, tag = 'input window, operand 7, single buffered']
    #allocation9 [shape = 's32[1]{0}', space=sflag, size = 0x4, scoped, tag = 'scoped memory for tpu_custom_call.1']
    #allocation10 [shape = 'u8[65536]{0}', space=vmem, size = 0x10000, scoped, tag = 'output window, operand 0']
    %16 = vsyncpa [#allocation3], 0
    %s17 = scalar_lea.sflag [#allocation3], 1
    %18 = vsyncpa %s17, 0
    %19 = vsyncpa [#allocation6], 0
    %20 = vsyncpa [#allocation9], 0
    %21 = vsyncpa [#allocation4], 0
    %s22 = scalar_lea.sflag [#allocation4], 1
    %23 = vsyncpa %s22, 0
    loop: start=0, step=1, limit=4
    $region2: #{tpu_custom_call.1} parent=1 // loop_pre_header
      _
    $region3: #{tpu_custom_call.1} parent=1 // loop_header
      %s25 = sphi 0, %s29
      %p26 = scmp.ge.s32.totalorder %s25, 4
      %s35 = sphi 0, %s37
      %s38 = sphi 0, %s35
      %s39 = sphi 0, %s38
      %s55 = sphi 0, %s39
      %s59 = sphi 0, %s59
      %s61 = sphi 0, %s59
      %s62 = sphi 0, %s61
      %s76 = sphi 0, %s62
      %s80 = sphi 0, %s80
      %s82 = sphi 0, %s80
      %s83 = sphi 0, %s82
      %s97 = sphi 0, %s83
      %s101 = sphi 0, %s101
      %s103 = sphi 0, %s101
      %s104 = sphi 0, %s103
      %s118 = sphi 0, %s104
      %s122 = sphi 0, %s122
      %s124 = sphi 0, %s122
      %s125 = sphi 0, %s124
      %s139 = sphi 0, %s125
      %s143 = sphi 0, %s143
      %s145 = sphi 0, %s143
      %s146 = sphi 0, %s145
      %s160 = sphi 0, %s146
      %s164 = sphi 0, %s164
      %s166 = sphi 0, %s164
      %s167 = sphi 0, %s166
      %s181 = sphi 0, %s167
      %s185 = sphi 0, %s185
      %s187 = sphi 0, %s185
      %s188 = sphi 0, %s187
      %s202 = sphi 0, %s188
      %s206 = sphi 0, %s206
      %s208 = sphi 0, %s206
      %s209 = sphi 0, %s208
      %s223 = sphi 0, %s209
      %s227 = sphi 0, %s227
      %s229 = sphi 0, %s227
      %s230 = sphi 0, %s229
      %s244 = sphi 0, %s230
      %s248 = sphi 0, %s248
      %s250 = sphi 0, %s248
      %s251 = sphi 0, %s250
      %s265 = sphi 0, %s251
      %s271 = sphi 0, %s273
      %s274 = sphi 0, %s271
      %s275 = sphi 0, %s274
      %s291 = sphi 0, %s275
    $region4: #{tpu_custom_call.1} parent=1 // loop_header_branch
      %28 = sbr.rel (%p26) target = $region8
    $region5: #{tpu_custom_call.1} parent=1 // loop_body
      %s30 = ssub.s32 %s25, 1
      %s31 = ssub.s32 %s25, 2
      %s32 = sadd.s32 %s25, 1
      %s33 = ssub.s32 %s25, %s32
      %p34 = scmp.eq.s32.totalorder %s33, 0
      %s36 = sadd.s32 %s35, 1
      %s37 = scalar_select %p34, %s35, %s36
      %p40 = pneg %p34
      %p41 = scmp.eq.s32.totalorder %s25, 1
      %p42 = por %p40, %p41
      %p43 = scmp.ne.s32.totalorder %s35, %s38
      %p44 = scmp.eq.s32.totalorder %s25, 0
      %p45 = por %p43, %p44
      %p46 = scmp.ne.s32.totalorder %s35, %s38
      %p47 = scmp.eq.s32.totalorder %s30, 1
      %p48 = por %p46, %p47
      %p49 = scmp.ne.s32.totalorder %s38, %s39
      %p50 = scmp.eq.s32.totalorder %s30, 0
      %p51 = por %p49, %p50
      %p52 = scmp.ne.s32.totalorder %s38, %s39
      %p53 = scmp.eq.s32.totalorder %s31, 1
      %p54 = por %p52, %p53
      %p56 = scmp.ne.s32.totalorder %s39, %s55
      %p57 = scmp.eq.s32.totalorder %s31, 0
      %p58 = por %p56, %p57
      %s60 = sadd.s32 %s59, 1
      %p63 = scmp.eq.s32.totalorder %s25, 1
      %p64 = scmp.ne.s32.totalorder %s59, %s61
      %p65 = scmp.eq.s32.totalorder %s25, 0
      %p66 = por %p64, %p65
      %p67 = scmp.ne.s32.totalorder %s59, %s61
      %p68 = scmp.eq.s32.totalorder %s30, 1
      %p69 = por %p67, %p68
      %p70 = scmp.ne.s32.totalorder %s61, %s62
      %p71 = scmp.eq.s32.totalorder %s30, 0
      %p72 = por %p70, %p71
      %p73 = scmp.ne.s32.totalorder %s61, %s62
      %p74 = scmp.eq.s32.totalorder %s31, 1
      %p75 = por %p73, %p74
      %p77 = scmp.ne.s32.totalorder %s62, %s76
      %p78 = scmp.eq.s32.totalorder %s31, 0
      %p79 = por %p77, %p78
      %s81 = sadd.s32 %s80, 1
      %p84 = scmp.eq.s32.totalorder %s25, 1
      %p85 = scmp.ne.s32.totalorder %s80, %s82
      %p86 = scmp.eq.s32.totalorder %s25, 0
      %p87 = por %p85, %p86
      %p88 = scmp.ne.s32.totalorder %s80, %s82
      %p89 = scmp.eq.s32.totalorder %s30, 1
      %p90 = por %p88, %p89
      %p91 = scmp.ne.s32.totalorder %s82, %s83
      %p92 = scmp.eq.s32.totalorder %s30, 0
      %p93 = por %p91, %p92
      %p94 = scmp.ne.s32.totalorder %s82, %s83
      %p95 = scmp.eq.s32.totalorder %s31, 1
      %p96 = por %p94, %p95
      %p98 = scmp.ne.s32.totalorder %s83, %s97
      %p99 = scmp.eq.s32.totalorder %s31, 0
      %p100 = por %p98, %p99
      %s102 = sadd.s32 %s101, 1
      %p105 = scmp.eq.s32.totalorder %s25, 1
      %p106 = scmp.ne.s32.totalorder %s101, %s103
      %p107 = scmp.eq.s32.totalorder %s25, 0
      %p108 = por %p106, %p107
      %p109 = scmp.ne.s32.totalorder %s101, %s103
      %p110 = scmp.eq.s32.totalorder %s30, 1
      %p111 = por %p109, %p110
      %p112 = scmp.ne.s32.totalorder %s103, %s104
      %p113 = scmp.eq.s32.totalorder %s30, 0
      %p114 = por %p112, %p113
      %p115 = scmp.ne.s32.totalorder %s103, %s104
      %p116 = scmp.eq.s32.totalorder %s31, 1
      %p117 = por %p115, %p116
      %p119 = scmp.ne.s32.totalorder %s104, %s118
      %p120 = scmp.eq.s32.totalorder %s31, 0
      %p121 = por %p119, %p120
      %s123 = sadd.s32 %s122, 1
      %p126 = scmp.eq.s32.totalorder %s25, 1
      %p127 = scmp.ne.s32.totalorder %s122, %s124
      %p128 = scmp.eq.s32.totalorder %s25, 0
      %p129 = por %p127, %p128
      %p130 = scmp.ne.s32.totalorder %s122, %s124
      %p131 = scmp.eq.s32.totalorder %s30, 1
      %p132 = por %p130, %p131
      %p133 = scmp.ne.s32.totalorder %s124, %s125
      %p134 = scmp.eq.s32.totalorder %s30, 0
      %p135 = por %p133, %p134
      %p136 = scmp.ne.s32.totalorder %s124, %s125
      %p137 = scmp.eq.s32.totalorder %s31, 1
      %p138 = por %p136, %p137
      %p140 = scmp.ne.s32.totalorder %s125, %s139
      %p141 = scmp.eq.s32.totalorder %s31, 0
      %p142 = por %p140, %p141
      %s144 = sadd.s32 %s143, 1
      %p147 = scmp.eq.s32.totalorder %s25, 1
      %p148 = scmp.ne.s32.totalorder %s143, %s145
      %p149 = scmp.eq.s32.totalorder %s25, 0
      %p150 = por %p148, %p149
      %p151 = scmp.ne.s32.totalorder %s143, %s145
      %p152 = scmp.eq.s32.totalorder %s30, 1
      %p153 = por %p151, %p152
      %p154 = scmp.ne.s32.totalorder %s145, %s146
      %p155 = scmp.eq.s32.totalorder %s30, 0
      %p156 = por %p154, %p155
      %p157 = scmp.ne.s32.totalorder %s145, %s146
      %p158 = scmp.eq.s32.totalorder %s31, 1
      %p159 = por %p157, %p158
      %p161 = scmp.ne.s32.totalorder %s146, %s160
      %p162 = scmp.eq.s32.totalorder %s31, 0
      %p163 = por %p161, %p162
      %s165 = sadd.s32 %s164, 1
      %p168 = scmp.eq.s32.totalorder %s25, 1
      %p169 = scmp.ne.s32.totalorder %s164, %s166
      %p170 = scmp.eq.s32.totalorder %s25, 0
      %p171 = por %p169, %p170
      %p172 = scmp.ne.s32.totalorder %s164, %s166
      %p173 = scmp.eq.s32.totalorder %s30, 1
      %p174 = por %p172, %p173
      %p175 = scmp.ne.s32.totalorder %s166, %s167
      %p176 = scmp.eq.s32.totalorder %s30, 0
      %p177 = por %p175, %p176
      %p178 = scmp.ne.s32.totalorder %s166, %s167
      %p179 = scmp.eq.s32.totalorder %s31, 1
      %p180 = por %p178, %p179
      %p182 = scmp.ne.s32.totalorder %s167, %s181
      %p183 = scmp.eq.s32.totalorder %s31, 0
      %p184 = por %p182, %p183
      %s186 = sadd.s32 %s185, 1
      %p189 = scmp.eq.s32.totalorder %s25, 1
      %p190 = scmp.ne.s32.totalorder %s185, %s187
      %p191 = scmp.eq.s32.totalorder %s25, 0
      %p192 = por %p190, %p191
      %p193 = scmp.ne.s32.totalorder %s185, %s187
      %p194 = scmp.eq.s32.totalorder %s30, 1
      %p195 = por %p193, %p194
      %p196 = scmp.ne.s32.totalorder %s187, %s188
      %p197 = scmp.eq.s32.totalorder %s30, 0
      %p198 = por %p196, %p197
      %p199 = scmp.ne.s32.totalorder %s187, %s188
      %p200 = scmp.eq.s32.totalorder %s31, 1
      %p201 = por %p199, %p200
      %p203 = scmp.ne.s32.totalorder %s188, %s202
      %p204 = scmp.eq.s32.totalorder %s31, 0
      %p205 = por %p203, %p204
      %s207 = sadd.s32 %s206, 1
      %p210 = scmp.eq.s32.totalorder %s25, 1
      %p211 = scmp.ne.s32.totalorder %s206, %s208
      %p212 = scmp.eq.s32.totalorder %s25, 0
      %p213 = por %p211, %p212
      %p214 = scmp.ne.s32.totalorder %s206, %s208
      %p215 = scmp.eq.s32.totalorder %s30, 1
      %p216 = por %p214, %p215
      %p217 = scmp.ne.s32.totalorder %s208, %s209
      %p218 = scmp.eq.s32.totalorder %s30, 0
      %p219 = por %p217, %p218
      %p220 = scmp.ne.s32.totalorder %s208, %s209
      %p221 = scmp.eq.s32.totalorder %s31, 1
      %p222 = por %p220, %p221
      %p224 = scmp.ne.s32.totalorder %s209, %s223
      %p225 = scmp.eq.s32.totalorder %s31, 0
      %p226 = por %p224, %p225
      %s228 = sadd.s32 %s227, 1
      %p231 = scmp.eq.s32.totalorder %s25, 1
      %p232 = scmp.ne.s32.totalorder %s227, %s229
      %p233 = scmp.eq.s32.totalorder %s25, 0
      %p234 = por %p232, %p233
      %p235 = scmp.ne.s32.totalorder %s227, %s229
      %p236 = scmp.eq.s32.totalorder %s30, 1
      %p237 = por %p235, %p236
      %p238 = scmp.ne.s32.totalorder %s229, %s230
      %p239 = scmp.eq.s32.totalorder %s30, 0
      %p240 = por %p238, %p239
      %p241 = scmp.ne.s32.totalorder %s229, %s230
      %p242 = scmp.eq.s32.totalorder %s31, 1
      %p243 = por %p241, %p242
      %p245 = scmp.ne.s32.totalorder %s230, %s244
      %p246 = scmp.eq.s32.totalorder %s31, 0
      %p247 = por %p245, %p246
      %s249 = sadd.s32 %s248, 1
      %p252 = scmp.eq.s32.totalorder %s25, 1
      %p253 = scmp.ne.s32.totalorder %s248, %s250
      %p254 = scmp.eq.s32.totalorder %s25, 0
      %p255 = por %p253, %p254
      %p256 = scmp.ne.s32.totalorder %s248, %s250
      %p257 = scmp.eq.s32.totalorder %s30, 1
      %p258 = por %p256, %p257
      %p259 = scmp.ne.s32.totalorder %s250, %s251
      %p260 = scmp.eq.s32.totalorder %s30, 0
      %p261 = por %p259, %p260
      %p262 = scmp.ne.s32.totalorder %s250, %s251
      %p263 = scmp.eq.s32.totalorder %s31, 1
      %p264 = por %p262, %p263
      %p266 = scmp.ne.s32.totalorder %s251, %s265
      %p267 = scmp.eq.s32.totalorder %s31, 0
      %p268 = por %p266, %p267
      %s269 = ssub.s32 %s25, %s32
      %p270 = scmp.eq.s32.totalorder %s269, 0
      %s272 = sadd.s32 %s271, 1
      %s273 = scalar_select %p270, %s271, %s272
      %p276 = pneg %p270
      %p277 = scmp.eq.s32.totalorder %s25, 1
      %p278 = por %p276, %p277
      %p279 = scmp.ne.s32.totalorder %s271, %s274
      %p280 = scmp.eq.s32.totalorder %s25, 0
      %p281 = por %p279, %p280
      %p282 = scmp.ne.s32.totalorder %s271, %s274
      %p283 = scmp.eq.s32.totalorder %s30, 1
      %p284 = por %p282, %p283
      %p285 = scmp.ne.s32.totalorder %s274, %s275
      %p286 = scmp.eq.s32.totalorder %s30, 0
      %p287 = por %p285, %p286
      %p288 = scmp.ne.s32.totalorder %s274, %s275
      %p289 = scmp.eq.s32.totalorder %s31, 1
      %p290 = por %p288, %p289
      %p292 = scmp.ne.s32.totalorder %s275, %s291
      %p293 = scmp.eq.s32.totalorder %s31, 0
      %p294 = por %p292, %p293
      %p295 = scmp.le.s32.totalorder 1, %s25
      %p296 = scmp.lt.s32.totalorder %s25, 3
      %p297 = pnand %p295, %p296
      %p298 = pneg %p297
      // Predicated region
      $region9: #{tpu_custom_call.1} parent=5 // pred_check
        _
      $region10: #{tpu_custom_call.1} parent=5 // pred_check_branch
        %300 = sbr.rel (%p297) target = $region12
      $region11: #{tpu_custom_call.1} parent=5 // pred_region
        %s301 = ssub.s32 %s25, 1
        // Predicated region
        $region13: #{tpu_custom_call.1} parent=11 // pred_check
          %p302 = pneg %p72
        $region14: #{tpu_custom_call.1} parent=11 // pred_check_branch
          %304 = sbr.rel (%p302) target = $region16
        $region15: #{tpu_custom_call.1} parent=11 // pred_region
          %306 = vsyncadd [#allocation6], 0
          %s307 = sshll.u32 %s1, 4
          %s308 = int_to_ptr.hbm [resolvable:$true] %s307
          %s309 = sshll.u32 [#allocation5], 4
          %s310 = int_to_ptr.vmem [resolvable:$true] %s309
          %315 = dma.hbm_to_vmem [thread:$0]  %s308, 4096, %s310, [#allocation6], 256, 256, 16
        $region16: #{tpu_custom_call.1} parent=11 // pred_fallthru
          _
        // Predicated region
        $region17: #{tpu_custom_call.1} parent=11 // pred_check
          %p316 = pneg %p93
        $region18: #{tpu_custom_call.1} parent=11 // pred_check_branch
          %318 = sbr.rel (%p316) target = $region20
        $region19: #{tpu_custom_call.1} parent=11 // pred_region
          _
        $region20: #{tpu_custom_call.1} parent=11 // pred_fallthru
          _
        // Predicated region
        $region21: #{tpu_custom_call.1} parent=11 // pred_check
          %p319 = pneg %p114
        $region22: #{tpu_custom_call.1} parent=11 // pred_check_branch
          %321 = sbr.rel (%p319) target = $region24
        $region23: #{tpu_custom_call.1} parent=11 // pred_region
          _
        $region24: #{tpu_custom_call.1} parent=11 // pred_fallthru
          _
        // Predicated region
        $region25: #{tpu_custom_call.1} parent=11 // pred_check
          %p322 = pneg %p135
        $region26: #{tpu_custom_call.1} parent=11 // pred_check_branch
          %324 = sbr.rel (%p322) target = $region28
        $region27: #{tpu_custom_call.1} parent=11 // pred_region
          %326 = vsyncadd [#allocation6], 0
          %s327 = sshll.u32 %s4, 4
          %s328 = int_to_ptr.hbm [resolvable:$true] %s327
          %s329 = sshll.u32 [#allocation7], 4
          %s330 = int_to_ptr.vmem [resolvable:$true] %s329
          %335 = dma.hbm_to_vmem [thread:$0]  %s328, 18432, %s330, [#allocation6], 128, 128, 8
        $region28: #{tpu_custom_call.1} parent=11 // pred_fallthru
          _
        // Predicated region
        $region29: #{tpu_custom_call.1} parent=11 // pred_check
          %p336 = pneg %p156
        $region30: #{tpu_custom_call.1} parent=11 // pred_check_branch
          %338 = sbr.rel (%p336) target = $region32
        $region31: #{tpu_custom_call.1} parent=11 // pred_region
          _
        $region32: #{tpu_custom_call.1} parent=11 // pred_fallthru
          _
        // Predicated region
        $region33: #{tpu_custom_call.1} parent=11 // pred_check
          %p339 = pneg %p177
        $region34: #{tpu_custom_call.1} parent=11 // pred_check_branch
          %341 = sbr.rel (%p339) target = $region36
        $region35: #{tpu_custom_call.1} parent=11 // pred_region
          _
        $region36: #{tpu_custom_call.1} parent=11 // pred_fallthru
          _
        // Predicated region
        $region37: #{tpu_custom_call.1} parent=11 // pred_check
          %p342 = pneg %p198
        $region38: #{tpu_custom_call.1} parent=11 // pred_check_branch
          %344 = sbr.rel (%p342) target = $region40
        $region39: #{tpu_custom_call.1} parent=11 // pred_region
          %346 = vsyncadd [#allocation9], 0
          %s347 = sshll.u32 %s7, 4
          %s348 = int_to_ptr.hbm [resolvable:$true] %s347
          %s349 = sshll.u32 [#allocation8], 4
          %s350 = int_to_ptr.vmem [resolvable:$true] %s349
          %355 = dma.hbm_to_vmem [thread:$0]  %s348, 2048, %s350, [#allocation9], 128, 128, 8
        $region40: #{tpu_custom_call.1} parent=11 // pred_fallthru
          _
        // Predicated region
        $region41: #{tpu_custom_call.1} parent=11 // pred_check
          %p356 = pneg %p219
        $region42: #{tpu_custom_call.1} parent=11 // pred_check_branch
          %358 = sbr.rel (%p356) target = $region44
        $region43: #{tpu_custom_call.1} parent=11 // pred_region
          _
        $region44: #{tpu_custom_call.1} parent=11 // pred_fallthru
          _
        // Predicated region
        $region45: #{tpu_custom_call.1} parent=11 // pred_check
          %p359 = pneg %p240
        $region46: #{tpu_custom_call.1} parent=11 // pred_check_branch
          %361 = sbr.rel (%p359) target = $region48
        $region47: #{tpu_custom_call.1} parent=11 // pred_region
          _
        $region48: #{tpu_custom_call.1} parent=11 // pred_fallthru
          _
        // Predicated region
        $region49: #{tpu_custom_call.1} parent=11 // pred_check
          %p362 = pneg %p261
        $region50: #{tpu_custom_call.1} parent=11 // pred_check_branch
          %364 = sbr.rel (%p362) target = $region52
        $region51: #{tpu_custom_call.1} parent=11 // pred_region
          _
        $region52: #{tpu_custom_call.1} parent=11 // pred_fallthru
          _
      $region12: #{tpu_custom_call.1} parent=5 // pred_fallthru
        _
      %p365 = scmp.lt.s32.totalorder %s25, 2
      // Predicated region
      $region53: #{tpu_custom_call.1} parent=5 // pred_check
        %p366 = pneg %p365
      $region54: #{tpu_custom_call.1} parent=5 // pred_check_branch
        %368 = sbr.rel (%p366) target = $region56
      $region55: #{tpu_custom_call.1} parent=5 // pred_region
        // Predicated region
        $region57: #{tpu_custom_call.1} parent=55 // pred_check
          %p369 = pneg %p45
        $region58: #{tpu_custom_call.1} parent=55 // pred_check_branch
          %371 = sbr.rel (%p369) target = $region60
        $region59: #{tpu_custom_call.1} parent=55 // pred_region
          %s372 = sand.u32 %s35, 1
          %s373 = scalar_lea.sflag [#allocation3], %s372
          %s374 = sand.u32 %s35, 1
          %s375 = smul.addr %s374, 64
          %s376 = scalar_lea.vmem [#allocation2], %s375
          %378 = vsyncadd %s373, 0
          %s379 = smul.addr %s25, 8
          %s380 = smul.addr %s379, 8
          %s381 = scalar_lea.hbm %s0, %s380
          %s382 = sshll.u32 %s381, 4
          %s383 = int_to_ptr.hbm [resolvable:$true] %s382
          %s384 = sshll.u32 %s376, 4
          %s385 = int_to_ptr.vmem [resolvable:$true] %s384
          %390 = dma.hbm_to_vmem [thread:$0]  %s383, 1024, %s385, %s373, 128, 128, 8
        $region60: #{tpu_custom_call.1} parent=55 // pred_fallthru
          _
      $region56: #{tpu_custom_call.1} parent=5 // pred_fallthru
        _
      %p391 = scmp.le.s32.totalorder 1, %s25
      %p392 = scmp.lt.s32.totalorder %s25, 3
      %p393 = pnand %p391, %p392
      %p394 = pneg %p393
      // Predicated region
      $region61: #{tpu_custom_call.1} parent=5 // pred_check
        _
      $region62: #{tpu_custom_call.1} parent=5 // pred_check_branch
        %396 = sbr.rel (%p393) target = $region64
      $region63: #{tpu_custom_call.1} parent=5 // pred_region
        %s397 = ssub.s32 %s25, 1
        %s398 = sand.u32 %s38, 1
        %s399 = scalar_lea.sflag [#allocation3], %s398
        %s400 = sand.u32 %s38, 1
        %s401 = smul.addr %s400, 64
        %s402 = scalar_lea.vmem [#allocation2], %s401
        // Predicated region
        $region65: #{tpu_custom_call.1} parent=63 // pred_check
          %p403 = pneg %p51
        $region66: #{tpu_custom_call.1} parent=63 // pred_check_branch
          %405 = sbr.rel (%p403) target = $region68
        $region67: #{tpu_custom_call.1} parent=63 // pred_region
          %407 = dma.done %s399, 1024
        $region68: #{tpu_custom_call.1} parent=63 // pred_fallthru
          _
        // Predicated region
        $region69: #{tpu_custom_call.1} parent=63 // pred_check
          %p408 = pneg %p72
        $region70: #{tpu_custom_call.1} parent=63 // pred_check_branch
          %410 = sbr.rel (%p408) target = $region72
        $region71: #{tpu_custom_call.1} parent=63 // pred_region
          %412 = dma.done [#allocation6], 4096
        $region72: #{tpu_custom_call.1} parent=63 // pred_fallthru
          _
        // Predicated region
        $region73: #{tpu_custom_call.1} parent=63 // pred_check
          %p413 = pneg %p135
        $region74: #{tpu_custom_call.1} parent=63 // pred_check_branch
          %415 = sbr.rel (%p413) target = $region76
        $region75: #{tpu_custom_call.1} parent=63 // pred_region
          %417 = dma.done [#allocation6], 18432
        $region76: #{tpu_custom_call.1} parent=63 // pred_fallthru
          _
        // Predicated region
        $region77: #{tpu_custom_call.1} parent=63 // pred_check
          %p418 = pneg %p198
        $region78: #{tpu_custom_call.1} parent=63 // pred_check_branch
          %420 = sbr.rel (%p418) target = $region80
        $region79: #{tpu_custom_call.1} parent=63 // pred_region
          %422 = dma.done [#allocation9], 2048
        $region80: #{tpu_custom_call.1} parent=63 // pred_fallthru
          _
        %s423 = sand.u32 %s38, 1
        %s424 = scalar_lea.sflag [#allocation3], %s423
        %s425 = sand.u32 %s38, 1
        %s426 = smul.addr %s425, 64
        %s427 = scalar_lea.vmem [#allocation2], %s426
        %p428 = pneg %p51
        %p429 = pneg %p48
        %p430 = pneg %p72
        %p431 = pneg %p69
        %p432 = pneg %p93
        %p433 = pneg %p90
        %p434 = pneg %p114
        %p435 = pneg %p111
        %p436 = pneg %p135
        %p437 = pneg %p132
        %p438 = pneg %p156
        %p439 = pneg %p153
        %p440 = pneg %p177
        %p441 = pneg %p174
        %p442 = pneg %p198
        %p443 = pneg %p195
        %p444 = pneg %p219
        %p445 = pneg %p216
        %p446 = pneg %p240
        %p447 = pneg %p237
        %p448 = pneg %p261
        %p449 = pneg %p258
        %p450 = pneg %p287
        %p451 = pneg %p284
        %s452 = sand.u32 %s274, 1
        %s453 = scalar_lea.sflag [#allocation4], %s452
        %s454 = sand.u32 %s274, 1
        %s455 = smul.addr %s454, 64
        %s456 = scalar_lea.vmem [#allocation10], %s455
        %v457 = vld [vmem:[%s402] sm:$0xff]
        %v458 = vld [vmem:[%s402 + $0x8] sm:$0xff]
        %v459 = vld [vmem:[%s402 + $0x10] sm:$0xff]
        %v460 = vld [vmem:[%s402 + $0x18] sm:$0xff]
        %v461 = vld [vmem:[%s402 + $0x20] sm:$0xff]
        %v462 = vld [vmem:[%s402 + $0x28] sm:$0xff]
        %v463 = vld [vmem:[%s402 + $0x30] sm:$0xff]
        %v464 = vld [vmem:[%s402 + $0x38] sm:$0xff]
        %v465 = vld [vmem:[#allocation5] sm:$0xff]
        %v466 = vld [vmem:[#allocation5 + $0x8] sm:$0xff]
        %v467 = vld [vmem:[#allocation5 + $0x10] sm:$0xff]
        %v468 = vld [vmem:[#allocation5 + $0x18] sm:$0xff]
        %v469 = vld [vmem:[#allocation5 + $0x20] sm:$0xff]
        %v470 = vld [vmem:[#allocation5 + $0x28] sm:$0xff]
        %v471 = vld [vmem:[#allocation5 + $0x30] sm:$0xff]
        %v472 = vld [vmem:[#allocation5 + $0x38] sm:$0xff]
        %v473 = vld [vmem:[#allocation5 + $0x40] sm:$0xff]
        %v474 = vld [vmem:[#allocation5 + $0x48] sm:$0xff]
        %v475 = vld [vmem:[#allocation5 + $0x50] sm:$0xff]
        %v476 = vld [vmem:[#allocation5 + $0x58] sm:$0xff]
        %v477 = vld [vmem:[#allocation5 + $0x60] sm:$0xff]
        %v478 = vld [vmem:[#allocation5 + $0x68] sm:$0xff]
        %v479 = vld [vmem:[#allocation5 + $0x70] sm:$0xff]
        %v480 = vld [vmem:[#allocation5 + $0x78] sm:$0xff]
        %v481 = vld [vmem:[#allocation5 + $0x80] sm:$0xff]
        %v482 = vld [vmem:[#allocation5 + $0x88] sm:$0xff]
        %v483 = vld [vmem:[#allocation5 + $0x90] sm:$0xff]
        %v484 = vld [vmem:[#allocation5 + $0x98] sm:$0xff]
        %v485 = vld [vmem:[#allocation5 + $0xa0] sm:$0xff]
        %v486 = vld [vmem:[#allocation5 + $0xa8] sm:$0xff]
        %v487 = vld [vmem:[#allocation5 + $0xb0] sm:$0xff]
        %v488 = vld [vmem:[#allocation5 + $0xb8] sm:$0xff]
        %v489 = vld [vmem:[#allocation5 + $0xc0] sm:$0xff]
        %v490 = vld [vmem:[#allocation5 + $0xc8] sm:$0xff]
        %v491 = vld [vmem:[#allocation5 + $0xd0] sm:$0xff]
        %v492 = vld [vmem:[#allocation5 + $0xd8] sm:$0xff]
        %v493 = vld [vmem:[#allocation5 + $0xe0] sm:$0xff]
        %v494 = vld [vmem:[#allocation5 + $0xe8] sm:$0xff]
        %v495 = vld [vmem:[#allocation5 + $0xf0] sm:$0xff]
        %v496 = vld [vmem:[#allocation5 + $0xf8] sm:$0xff]
        %497 = vmatpush.msra.mxu0 %v495
        %498 = vmatpush.msra.mxu0 %v493
        %499 = vmatpush.msra.mxu0 %v491
        %500 = vmatpush.msra.mxu0 %v489
        %501 = vmatpush.msra.mxu0 %v487
        %502 = vmatpush.msra.mxu0 %v485
        %503 = vmatpush.msra.mxu0 %v483
        %504 = vmatpush.msra.mxu0 %v481
        %505 = vmatpush.msra.mxu0 %v479
        %506 = vmatpush.msra.mxu0 %v477
        %507 = vmatpush.msra.mxu0 %v475
        %508 = vmatpush.msra.mxu0 %v473
        %509 = vmatpush.msra.mxu0 %v471
        %510 = vmatpush.msra.mxu0 %v469
        %511 = vmatpush.msra.mxu0 %v467
        %512 = vmatpush.msra.mxu0 %v465
        %513 = vmatmul.f32.gmra.mxu0 %v457
        %v514 = vpop.f32.mrf.mxu0
        %v515 = vadd.f32 0.0, %v514
        %516 = vmatmul.f32.gmra.mxu0 %v458
        %v517 = vpop.f32.mrf.mxu0
        %v518 = vadd.f32 0.0, %v517
        %519 = vmatmul.f32.gmra.mxu0 %v459
        %v520 = vpop.f32.mrf.mxu0
        %v521 = vadd.f32 0.0, %v520
        %522 = vmatmul.f32.gmra.mxu0 %v460
        %v523 = vpop.f32.mrf.mxu0
        %v524 = vadd.f32 0.0, %v523
        %525 = vmatmul.f32.gmra.mxu0 %v461
        %v526 = vpop.f32.mrf.mxu0
        %v527 = vadd.f32 0.0, %v526
        %528 = vmatmul.f32.gmra.mxu0 %v462
        %v529 = vpop.f32.mrf.mxu0
        %v530 = vadd.f32 0.0, %v529
        %531 = vmatmul.f32.gmra.mxu0 %v463
        %v532 = vpop.f32.mrf.mxu0
        %v533 = vadd.f32 0.0, %v532
        %534 = vmatmul.f32.gmra.mxu0 %v464
        %v535 = vpop.f32.mrf.mxu0
        %v536 = vadd.f32 0.0, %v535
        %537 = vdwg.mxu0
        %538 = vmatpush.msra.mxu0 %v496
        %539 = vmatpush.msra.mxu0 %v494
        %540 = vmatpush.msra.mxu0 %v492
        %541 = vmatpush.msra.mxu0 %v490
        %542 = vmatpush.msra.mxu0 %v488
        %543 = vmatpush.msra.mxu0 %v486
        %544 = vmatpush.msra.mxu0 %v484
        %545 = vmatpush.msra.mxu0 %v482
        %546 = vmatpush.msra.mxu0 %v480
        %547 = vmatpush.msra.mxu0 %v478
        %548 = vmatpush.msra.mxu0 %v476
        %549 = vmatpush.msra.mxu0 %v474
        %550 = vmatpush.msra.mxu0 %v472
        %551 = vmatpush.msra.mxu0 %v470
        %552 = vmatpush.msra.mxu0 %v468
        %553 = vmatpush.msra.mxu0 %v466
        %554 = vmatmul.f32.gmra.mxu0 %v457
        %v555 = vpop.f32.mrf.mxu0
        %v556 = vadd.f32 0.0, %v555
        %557 = vmatmul.f32.gmra.mxu0 %v458
        %v558 = vpop.f32.mrf.mxu0
        %v559 = vadd.f32 0.0, %v558
        %560 = vmatmul.f32.gmra.mxu0 %v459
        %v561 = vpop.f32.mrf.mxu0
        %v562 = vadd.f32 0.0, %v561
        %563 = vmatmul.f32.gmra.mxu0 %v460
        %v564 = vpop.f32.mrf.mxu0
        %v565 = vadd.f32 0.0, %v564
        %566 = vmatmul.f32.gmra.mxu0 %v461
        %v567 = vpop.f32.mrf.mxu0
        %v568 = vadd.f32 0.0, %v567
        %569 = vmatmul.f32.gmra.mxu0 %v462
        %v570 = vpop.f32.mrf.mxu0
        %v571 = vadd.f32 0.0, %v570
        %572 = vmatmul.f32.gmra.mxu0 %v463
        %v573 = vpop.f32.mrf.mxu0
        %v574 = vadd.f32 0.0, %v573
        %575 = vmatmul.f32.gmra.mxu0 %v464
        %v576 = vpop.f32.mrf.mxu0
        %v577 = vadd.f32 0.0, %v576
        %578 = vdwg.mxu0
        %v579 = vld [vmem:[%s2] sm:$0x1]
        %v581 = vperm.slane %v579, 0
        %v583 = vmul.f32 %v515, %v581
        %v584 = vmul.f32 %v518, %v581
        %v585 = vmul.f32 %v521, %v581
        %v586 = vmul.f32 %v524, %v581
        %v587 = vmul.f32 %v527, %v581
        %v588 = vmul.f32 %v530, %v581
        %v589 = vmul.f32 %v533, %v581
        %v590 = vmul.f32 %v536, %v581
        %v591 = vld [vmem:[%s3] sm:$0x1]
        %v593 = vperm.slane %v591, 0
        %v595 = vadd.f32 %v583, %v593
        %v596 = vadd.f32 %v584, %v593
        %v597 = vadd.f32 %v585, %v593
        %v598 = vadd.f32 %v586, %v593
        %v599 = vadd.f32 %v587, %v593
        %v600 = vadd.f32 %v588, %v593
        %v601 = vadd.f32 %v589, %v593
        %v602 = vadd.f32 %v590, %v593
        %v603 = vmax.f32 %v595, 0.0
        %v604 = vmax.f32 %v596, 0.0
        %v605 = vmax.f32 %v597, 0.0
        %v606 = vmax.f32 %v598, 0.0
        %v607 = vmax.f32 %v599, 0.0
        %v608 = vmax.f32 %v600, 0.0
        %v609 = vmax.f32 %v601, 0.0
        %v610 = vmax.f32 %v602, 0.0
        %v611 = vld [vmem:[%s10] sm:$0x1]
        %v613 = vperm.slane %v611, 0
        %v615 = vadd.f32 %v556, %v613
        %v616 = vadd.f32 %v559, %v613
        %v617 = vadd.f32 %v562, %v613
        %v618 = vadd.f32 %v565, %v613
        %v619 = vadd.f32 %v568, %v613
        %v620 = vadd.f32 %v571, %v613
        %v621 = vadd.f32 %v574, %v613
        %v622 = vadd.f32 %v577, %v613
        %v623 = vlaneseq
        %v624 = vshrl.u32 %v623, 7
        %v625 = vadd.s32 %v624, 8
        %v626 = vadd.s32 %v624, 16
        %v627 = vadd.s32 %v624, 24
        %v628 = vadd.s32 %v624, 32
        %v629 = vadd.s32 %v624, 40
        %v630 = vadd.s32 %v624, 48
        %v631 = vadd.s32 %v624, 56
        %v632 = vand.u32 %v624, 7
        %v633 = vand.u32 %v625, 7
        %v634 = vand.u32 %v626, 7
        %v635 = vand.u32 %v627, 7
        %v636 = vand.u32 %v628, 7
        %v637 = vand.u32 %v629, 7
        %v638 = vand.u32 %v630, 7
        %v639 = vand.u32 %v631, 7
        %v640 = vand.u32 %v624, 63
        %v641 = vand.u32 %v625, 63
        %v642 = vand.u32 %v626, 63
        %v643 = vand.u32 %v627, 63
        %v644 = vand.u32 %v628, 63
        %v645 = vand.u32 %v629, 63
        %v646 = vand.u32 %v630, 63
        %v647 = vand.u32 %v631, 63
        %vm648 = vcmp.ge.s32.totalorder %v632, 1
        %vm649 = vcmp.ge.s32.totalorder %v633, 1
        %vm650 = vcmp.ge.s32.totalorder %v634, 1
        %vm651 = vcmp.ge.s32.totalorder %v635, 1
        %vm652 = vcmp.ge.s32.totalorder %v636, 1
        %vm653 = vcmp.ge.s32.totalorder %v637, 1
        %vm654 = vcmp.ge.s32.totalorder %v638, 1
        %vm655 = vcmp.ge.s32.totalorder %v639, 1
        %vm656 = vcmp.le.s32.totalorder %v632, 6
        %vm657 = vcmp.le.s32.totalorder %v633, 6
        %vm658 = vcmp.le.s32.totalorder %v634, 6
        %vm659 = vcmp.le.s32.totalorder %v635, 6
        %vm660 = vcmp.le.s32.totalorder %v636, 6
        %vm661 = vcmp.le.s32.totalorder %v637, 6
        %vm662 = vcmp.le.s32.totalorder %v638, 6
        %vm663 = vcmp.le.s32.totalorder %v639, 6
        %vm664 = vcmp.ge.s32.totalorder %v640, 8
        %vm665 = vcmp.ge.s32.totalorder %v641, 8
        %vm666 = vcmp.ge.s32.totalorder %v642, 8
        %vm667 = vcmp.ge.s32.totalorder %v643, 8
        %vm668 = vcmp.ge.s32.totalorder %v644, 8
        %vm669 = vcmp.ge.s32.totalorder %v645, 8
        %vm670 = vcmp.ge.s32.totalorder %v646, 8
        %vm671 = vcmp.ge.s32.totalorder %v647, 8
        %vm672 = vcmp.lt.s32.totalorder %v640, 56
        %vm673 = vcmp.lt.s32.totalorder %v641, 56
        %vm674 = vcmp.lt.s32.totalorder %v642, 56
        %vm675 = vcmp.lt.s32.totalorder %v643, 56
        %vm676 = vcmp.lt.s32.totalorder %v644, 56
        %vm677 = vcmp.lt.s32.totalorder %v645, 56
        %vm678 = vcmp.lt.s32.totalorder %v646, 56
        %vm679 = vcmp.lt.s32.totalorder %v647, 56
        %v680 = vrot.slane %v603, 7
        %v681 = vrot.slane %v604, 7
        %v682 = vrot.slane %v605, 7
        %v683 = vrot.slane %v606, 7
        %v684 = vrot.slane %v607, 7
        %v685 = vrot.slane %v608, 7
        %v686 = vrot.slane %v609, 7
        %v687 = vrot.slane %v610, 7
        %vm688 = vcmp.lt.s32.totalorder %v624, 1
        %v689 = vsel %vm688, %v686, %v687
        %v690 = vsel %vm688, %v685, %v686
        %v691 = vsel %vm688, %v684, %v685
        %v692 = vsel %vm688, %v683, %v684
        %v693 = vsel %vm688, %v682, %v683
        %v694 = vsel %vm688, %v681, %v682
        %v695 = vsel %vm688, %v680, %v681
        %v696 = vsel %vm688, %v687, %v680
        %v697 = vsel %vm648, 1, 0
        %v698 = vsel %vm649, 1, 0
        %v699 = vsel %vm650, 1, 0
        %v700 = vsel %vm651, 1, 0
        %v701 = vsel %vm652, 1, 0
        %v702 = vsel %vm653, 1, 0
        %v703 = vsel %vm654, 1, 0
        %v704 = vsel %vm655, 1, 0
        %vm705 = vcmp.eq.s32.totalorder %v697, 1
        %vm706 = vcmp.eq.s32.totalorder %v698, 1
        %vm707 = vcmp.eq.s32.totalorder %v699, 1
        %vm708 = vcmp.eq.s32.totalorder %v700, 1
        %vm709 = vcmp.eq.s32.totalorder %v701, 1
        %vm710 = vcmp.eq.s32.totalorder %v702, 1
        %vm711 = vcmp.eq.s32.totalorder %v703, 1
        %vm712 = vcmp.eq.s32.totalorder %v704, 1
        %v713 = vsel %vm705, %v696, 0.0
        %v714 = vsel %vm706, %v695, 0.0
        %v715 = vsel %vm707, %v694, 0.0
        %v716 = vsel %vm708, %v693, 0.0
        %v717 = vsel %vm709, %v692, 0.0
        %v718 = vsel %vm710, %v691, 0.0
        %v719 = vsel %vm711, %v690, 0.0
        %v720 = vsel %vm712, %v689, 0.0
        %v721 = vrot.slane %v603, 1
        %v722 = vrot.slane %v604, 1
        %v723 = vrot.slane %v605, 1
        %v724 = vrot.slane %v606, 1
        %v725 = vrot.slane %v607, 1
        %v726 = vrot.slane %v608, 1
        %v727 = vrot.slane %v609, 1
        %v728 = vrot.slane %v610, 1
        %vm729 = vcmp.lt.s32.totalorder %v624, 7
        %v730 = vsel %vm729, %v727, %v728
        %v731 = vsel %vm729, %v726, %v727
        %v732 = vsel %vm729, %v725, %v726
        %v733 = vsel %vm729, %v724, %v725
        %v734 = vsel %vm729, %v723, %v724
        %v735 = vsel %vm729, %v722, %v723
        %v736 = vsel %vm729, %v721, %v722
        %v737 = vsel %vm729, %v728, %v721
        %v738 = vsel %vm656, 1, 0
        %v739 = vsel %vm657, 1, 0
        %v740 = vsel %vm658, 1, 0
        %v741 = vsel %vm659, 1, 0
        %v742 = vsel %vm660, 1, 0
        %v743 = vsel %vm661, 1, 0
        %v744 = vsel %vm662, 1, 0
        %v745 = vsel %vm663, 1, 0
        %vm746 = vcmp.eq.s32.totalorder %v738, 1
        %vm747 = vcmp.eq.s32.totalorder %v739, 1
        %vm748 = vcmp.eq.s32.totalorder %v740, 1
        %vm749 = vcmp.eq.s32.totalorder %v741, 1
        %vm750 = vcmp.eq.s32.totalorder %v742, 1
        %vm751 = vcmp.eq.s32.totalorder %v743, 1
        %vm752 = vcmp.eq.s32.totalorder %v744, 1
        %vm753 = vcmp.eq.s32.totalorder %v745, 1
        %v754 = vsel %vm746, %v736, 0.0
        %v755 = vsel %vm747, %v735, 0.0
        %v756 = vsel %vm748, %v734, 0.0
        %v757 = vsel %vm749, %v733, 0.0
        %v758 = vsel %vm750, %v732, 0.0
        %v759 = vsel %vm751, %v731, 0.0
        %v760 = vsel %vm752, %v730, 0.0
        %v761 = vsel %vm753, %v737, 0.0
        %v762 = vld [vmem:[#allocation7] sm:$0xff]
        %v763 = vld [vmem:[#allocation7 + $0x8] sm:$0xff]
        %v764 = vld [vmem:[#allocation7 + $0x10] sm:$0xff]
        %v765 = vld [vmem:[#allocation7 + $0x18] sm:$0xff]
        %v766 = vld [vmem:[#allocation7 + $0x20] sm:$0xff]
        %v767 = vld [vmem:[#allocation7 + $0x28] sm:$0xff]
        %v768 = vld [vmem:[#allocation7 + $0x30] sm:$0xff]
        %v769 = vld [vmem:[#allocation7 + $0x38] sm:$0xff]
        %v770 = vld [vmem:[#allocation7 + $0x40] sm:$0xff]
        %v771 = vld [vmem:[#allocation7 + $0x48] sm:$0xff]
        %v772 = vld [vmem:[#allocation7 + $0x50] sm:$0xff]
        %v773 = vld [vmem:[#allocation7 + $0x58] sm:$0xff]
        %v774 = vld [vmem:[#allocation7 + $0x60] sm:$0xff]
        %v775 = vld [vmem:[#allocation7 + $0x68] sm:$0xff]
        %v776 = vld [vmem:[#allocation7 + $0x70] sm:$0xff]
        %v777 = vld [vmem:[#allocation7 + $0x78] sm:$0xff]
        %s778 = scalar_lea.vmem [#allocation7], 128
        %v779 = vld [vmem:[%s778] sm:$0xff]
        %v780 = vld [vmem:[%s778 + $0x8] sm:$0xff]
        %v781 = vld [vmem:[%s778 + $0x10] sm:$0xff]
        %v782 = vld [vmem:[%s778 + $0x18] sm:$0xff]
        %v783 = vld [vmem:[%s778 + $0x20] sm:$0xff]
        %v784 = vld [vmem:[%s778 + $0x28] sm:$0xff]
        %v785 = vld [vmem:[%s778 + $0x30] sm:$0xff]
        %v786 = vld [vmem:[%s778 + $0x38] sm:$0xff]
        %v787 = vld [vmem:[%s778 + $0x40] sm:$0xff]
        %v788 = vld [vmem:[%s778 + $0x48] sm:$0xff]
        %v789 = vld [vmem:[%s778 + $0x50] sm:$0xff]
        %v790 = vld [vmem:[%s778 + $0x58] sm:$0xff]
        %v791 = vld [vmem:[%s778 + $0x60] sm:$0xff]
        %v792 = vld [vmem:[%s778 + $0x68] sm:$0xff]
        %v793 = vld [vmem:[%s778 + $0x70] sm:$0xff]
        %v794 = vld [vmem:[%s778 + $0x78] sm:$0xff]
        %795 = vmatpush.msra.mxu0 %v794
        %796 = vmatpush.msra.mxu0 %v793
        %797 = vmatpush.msra.mxu0 %v792
        %798 = vmatpush.msra.mxu0 %v791
        %799 = vmatpush.msra.mxu0 %v790
        %800 = vmatpush.msra.mxu0 %v789
        %801 = vmatpush.msra.mxu0 %v788
        %802 = vmatpush.msra.mxu0 %v787
        %803 = vmatpush.msra.mxu0 %v786
        %804 = vmatpush.msra.mxu0 %v785
        %805 = vmatpush.msra.mxu0 %v784
        %806 = vmatpush.msra.mxu0 %v783
        %807 = vmatpush.msra.mxu0 %v782
        %808 = vmatpush.msra.mxu0 %v781
        %809 = vmatpush.msra.mxu0 %v780
        %810 = vmatpush.msra.mxu0 %v779
        %811 = vmatmul.f32.gmra.mxu0 %v603
        %v812 = vpop.f32.mrf.mxu0
        %v813 = vadd.f32 0.0, %v812
        %814 = vmatmul.f32.gmra.mxu0 %v604
        %v815 = vpop.f32.mrf.mxu0
        %v816 = vadd.f32 0.0, %v815
        %817 = vmatmul.f32.gmra.mxu0 %v605
        %v818 = vpop.f32.mrf.mxu0
        %v819 = vadd.f32 0.0, %v818
        %820 = vmatmul.f32.gmra.mxu0 %v606
        %v821 = vpop.f32.mrf.mxu0
        %v822 = vadd.f32 0.0, %v821
        %823 = vmatmul.f32.gmra.mxu0 %v607
        %v824 = vpop.f32.mrf.mxu0
        %v825 = vadd.f32 0.0, %v824
        %826 = vmatmul.f32.gmra.mxu0 %v608
        %v827 = vpop.f32.mrf.mxu0
        %v828 = vadd.f32 0.0, %v827
        %829 = vmatmul.f32.gmra.mxu0 %v609
        %v830 = vpop.f32.mrf.mxu0
        %v831 = vadd.f32 0.0, %v830
        %832 = vmatmul.f32.gmra.mxu0 %v610
        %v833 = vpop.f32.mrf.mxu0
        %v834 = vadd.f32 0.0, %v833
        %835 = vdwg.mxu0
        %836 = vmatpush.msra.mxu0 %v777
        %837 = vmatpush.msra.mxu0 %v776
        %838 = vmatpush.msra.mxu0 %v775
        %839 = vmatpush.msra.mxu0 %v774
        %840 = vmatpush.msra.mxu0 %v773
        %841 = vmatpush.msra.mxu0 %v772
        %842 = vmatpush.msra.mxu0 %v771
        %843 = vmatpush.msra.mxu0 %v770
        %844 = vmatpush.msra.mxu0 %v769
        %845 = vmatpush.msra.mxu0 %v768
        %846 = vmatpush.msra.mxu0 %v767
        %847 = vmatpush.msra.mxu0 %v766
        %848 = vmatpush.msra.mxu0 %v765
        %849 = vmatpush.msra.mxu0 %v764
        %850 = vmatpush.msra.mxu0 %v763
        %851 = vmatpush.msra.mxu0 %v762
        %852 = vmatmul.f32.gmra.mxu0 %v713
        %v853 = vpop.f32.mrf.mxu0
        %v854 = vadd.f32 %v813, %v853
        %855 = vmatmul.f32.gmra.mxu0 %v714
        %v856 = vpop.f32.mrf.mxu0
        %v857 = vadd.f32 %v816, %v856
        %858 = vmatmul.f32.gmra.mxu0 %v715
        %v859 = vpop.f32.mrf.mxu0
        %v860 = vadd.f32 %v819, %v859
        %861 = vmatmul.f32.gmra.mxu0 %v716
        %v862 = vpop.f32.mrf.mxu0
        %v863 = vadd.f32 %v822, %v862
        %864 = vmatmul.f32.gmra.mxu0 %v717
        %v865 = vpop.f32.mrf.mxu0
        %v866 = vadd.f32 %v825, %v865
        %867 = vmatmul.f32.gmra.mxu0 %v718
        %v868 = vpop.f32.mrf.mxu0
        %v869 = vadd.f32 %v828, %v868
        %870 = vmatmul.f32.gmra.mxu0 %v719
        %v871 = vpop.f32.mrf.mxu0
        %v872 = vadd.f32 %v831, %v871
        %873 = vmatmul.f32.gmra.mxu0 %v720
        %v874 = vpop.f32.mrf.mxu0
        %v875 = vadd.f32 %v834, %v874
        %876 = vdwg.mxu0
        %s877 = scalar_lea.vmem [#allocation7], 256
        %v878 = vld [vmem:[%s877] sm:$0xff]
        %v879 = vld [vmem:[%s877 + $0x8] sm:$0xff]
        %v880 = vld [vmem:[%s877 + $0x10] sm:$0xff]
        %v881 = vld [vmem:[%s877 + $0x18] sm:$0xff]
        %v882 = vld [vmem:[%s877 + $0x20] sm:$0xff]
        %v883 = vld [vmem:[%s877 + $0x28] sm:$0xff]
        %v884 = vld [vmem:[%s877 + $0x30] sm:$0xff]
        %v885 = vld [vmem:[%s877 + $0x38] sm:$0xff]
        %v886 = vld [vmem:[%s877 + $0x40] sm:$0xff]
        %v887 = vld [vmem:[%s877 + $0x48] sm:$0xff]
        %v888 = vld [vmem:[%s877 + $0x50] sm:$0xff]
        %v889 = vld [vmem:[%s877 + $0x58] sm:$0xff]
        %v890 = vld [vmem:[%s877 + $0x60] sm:$0xff]
        %v891 = vld [vmem:[%s877 + $0x68] sm:$0xff]
        %v892 = vld [vmem:[%s877 + $0x70] sm:$0xff]
        %v893 = vld [vmem:[%s877 + $0x78] sm:$0xff]
        %894 = vmatpush.msra.mxu0 %v893
        %895 = vmatpush.msra.mxu0 %v892
        %896 = vmatpush.msra.mxu0 %v891
        %897 = vmatpush.msra.mxu0 %v890
        %898 = vmatpush.msra.mxu0 %v889
        %899 = vmatpush.msra.mxu0 %v888
        %900 = vmatpush.msra.mxu0 %v887
        %901 = vmatpush.msra.mxu0 %v886
        %902 = vmatpush.msra.mxu0 %v885
        %903 = vmatpush.msra.mxu0 %v884
        %904 = vmatpush.msra.mxu0 %v883
        %905 = vmatpush.msra.mxu0 %v882
        %906 = vmatpush.msra.mxu0 %v881
        %907 = vmatpush.msra.mxu0 %v880
        %908 = vmatpush.msra.mxu0 %v879
        %909 = vmatpush.msra.mxu0 %v878
        %910 = vmatmul.f32.gmra.mxu0 %v754
        %v911 = vpop.f32.mrf.mxu0
        %v912 = vadd.f32 0.0, %v911
        %913 = vmatmul.f32.gmra.mxu0 %v755
        %v914 = vpop.f32.mrf.mxu0
        %v915 = vadd.f32 0.0, %v914
        %916 = vmatmul.f32.gmra.mxu0 %v756
        %v917 = vpop.f32.mrf.mxu0
        %v918 = vadd.f32 0.0, %v917
        %919 = vmatmul.f32.gmra.mxu0 %v757
        %v920 = vpop.f32.mrf.mxu0
        %v921 = vadd.f32 0.0, %v920
        %922 = vmatmul.f32.gmra.mxu0 %v758
        %v923 = vpop.f32.mrf.mxu0
        %v924 = vadd.f32 0.0, %v923
        %925 = vmatmul.f32.gmra.mxu0 %v759
        %v926 = vpop.f32.mrf.mxu0
        %v927 = vadd.f32 0.0, %v926
        %928 = vmatmul.f32.gmra.mxu0 %v760
        %v929 = vpop.f32.mrf.mxu0
        %v930 = vadd.f32 0.0, %v929
        %931 = vmatmul.f32.gmra.mxu0 %v761
        %v932 = vpop.f32.mrf.mxu0
        %v933 = vadd.f32 0.0, %v932
        %934 = vdwg.mxu0
        %v935 = vadd.f32 %v854, %v912
        %v936 = vadd.f32 %v857, %v915
        %v937 = vadd.f32 %v860, %v918
        %v938 = vadd.f32 %v863, %v921
        %v939 = vadd.f32 %v866, %v924
        %v940 = vadd.f32 %v869, %v927
        %v941 = vadd.f32 %v872, %v930
        %v942 = vadd.f32 %v875, %v933
        %v943 = vsel %vm664, 1, 0
        %v944 = vsel %vm665, 1, 0
        %v945 = vsel %vm666, 1, 0
        %v946 = vsel %vm667, 1, 0
        %v947 = vsel %vm668, 1, 0
        %v948 = vsel %vm669, 1, 0
        %v949 = vsel %vm670, 1, 0
        %v950 = vsel %vm671, 1, 0
        %vm951 = vcmp.eq.s32.totalorder %v943, 1
        %vm952 = vcmp.eq.s32.totalorder %v944, 1
        %vm953 = vcmp.eq.s32.totalorder %v945, 1
        %vm954 = vcmp.eq.s32.totalorder %v946, 1
        %vm955 = vcmp.eq.s32.totalorder %v947, 1
        %vm956 = vcmp.eq.s32.totalorder %v948, 1
        %vm957 = vcmp.eq.s32.totalorder %v949, 1
        %vm958 = vcmp.eq.s32.totalorder %v950, 1
        %v959 = vsel %vm951, %v942, 0.0
        %v960 = vsel %vm952, %v935, 0.0
        %v961 = vsel %vm953, %v936, 0.0
        %v962 = vsel %vm954, %v937, 0.0
        %v963 = vsel %vm955, %v938, 0.0
        %v964 = vsel %vm956, %v939, 0.0
        %v965 = vsel %vm957, %v940, 0.0
        %v966 = vsel %vm958, %v941, 0.0
        %s967 = scalar_lea.vmem [#allocation7], 384
        %v968 = vld [vmem:[%s967] sm:$0xff]
        %v969 = vld [vmem:[%s967 + $0x8] sm:$0xff]
        %v970 = vld [vmem:[%s967 + $0x10] sm:$0xff]
        %v971 = vld [vmem:[%s967 + $0x18] sm:$0xff]
        %v972 = vld [vmem:[%s967 + $0x20] sm:$0xff]
        %v973 = vld [vmem:[%s967 + $0x28] sm:$0xff]
        %v974 = vld [vmem:[%s967 + $0x30] sm:$0xff]
        %v975 = vld [vmem:[%s967 + $0x38] sm:$0xff]
        %v976 = vld [vmem:[%s967 + $0x40] sm:$0xff]
        %v977 = vld [vmem:[%s967 + $0x48] sm:$0xff]
        %v978 = vld [vmem:[%s967 + $0x50] sm:$0xff]
        %v979 = vld [vmem:[%s967 + $0x58] sm:$0xff]
        %v980 = vld [vmem:[%s967 + $0x60] sm:$0xff]
        %v981 = vld [vmem:[%s967 + $0x68] sm:$0xff]
        %v982 = vld [vmem:[%s967 + $0x70] sm:$0xff]
        %v983 = vld [vmem:[%s967 + $0x78] sm:$0xff]
        %s984 = scalar_lea.vmem [#allocation7], 512
        %v985 = vld [vmem:[%s984] sm:$0xff]
        %v986 = vld [vmem:[%s984 + $0x8] sm:$0xff]
        %v987 = vld [vmem:[%s984 + $0x10] sm:$0xff]
        %v988 = vld [vmem:[%s984 + $0x18] sm:$0xff]
        %v989 = vld [vmem:[%s984 + $0x20] sm:$0xff]
        %v990 = vld [vmem:[%s984 + $0x28] sm:$0xff]
        %v991 = vld [vmem:[%s984 + $0x30] sm:$0xff]
        %v992 = vld [vmem:[%s984 + $0x38] sm:$0xff]
        %v993 = vld [vmem:[%s984 + $0x40] sm:$0xff]
        %v994 = vld [vmem:[%s984 + $0x48] sm:$0xff]
        %v995 = vld [vmem:[%s984 + $0x50] sm:$0xff]
        %v996 = vld [vmem:[%s984 + $0x58] sm:$0xff]
        %v997 = vld [vmem:[%s984 + $0x60] sm:$0xff]
        %v998 = vld [vmem:[%s984 + $0x68] sm:$0xff]
        %v999 = vld [vmem:[%s984 + $0x70] sm:$0xff]
        %v1000 = vld [vmem:[%s984 + $0x78] sm:$0xff]
        %1001 = vmatpush.msra.mxu0 %v1000
        %1002 = vmatpush.msra.mxu0 %v999
        %1003 = vmatpush.msra.mxu0 %v998
        %1004 = vmatpush.msra.mxu0 %v997
        %1005 = vmatpush.msra.mxu0 %v996
        %1006 = vmatpush.msra.mxu0 %v995
        %1007 = vmatpush.msra.mxu0 %v994
        %1008 = vmatpush.msra.mxu0 %v993
        %1009 = vmatpush.msra.mxu0 %v992
        %1010 = vmatpush.msra.mxu0 %v991
        %1011 = vmatpush.msra.mxu0 %v990
        %1012 = vmatpush.msra.mxu0 %v989
        %1013 = vmatpush.msra.mxu0 %v988
        %1014 = vmatpush.msra.mxu0 %v987
        %1015 = vmatpush.msra.mxu0 %v986
        %1016 = vmatpush.msra.mxu0 %v985
        %1017 = vmatmul.f32.gmra.mxu0 %v603
        %v1018 = vpop.f32.mrf.mxu0
        %v1019 = vadd.f32 0.0, %v1018
        %1020 = vmatmul.f32.gmra.mxu0 %v604
        %v1021 = vpop.f32.mrf.mxu0
        %v1022 = vadd.f32 0.0, %v1021
        %1023 = vmatmul.f32.gmra.mxu0 %v605
        %v1024 = vpop.f32.mrf.mxu0
        %v1025 = vadd.f32 0.0, %v1024
        %1026 = vmatmul.f32.gmra.mxu0 %v606
        %v1027 = vpop.f32.mrf.mxu0
        %v1028 = vadd.f32 0.0, %v1027
        %1029 = vmatmul.f32.gmra.mxu0 %v607
        %v1030 = vpop.f32.mrf.mxu0
        %v1031 = vadd.f32 0.0, %v1030
        %1032 = vmatmul.f32.gmra.mxu0 %v608
        %v1033 = vpop.f32.mrf.mxu0
        %v1034 = vadd.f32 0.0, %v1033
        %1035 = vmatmul.f32.gmra.mxu0 %v609
        %v1036 = vpop.f32.mrf.mxu0
        %v1037 = vadd.f32 0.0, %v1036
        %1038 = vmatmul.f32.gmra.mxu0 %v610
        %v1039 = vpop.f32.mrf.mxu0
        %v1040 = vadd.f32 0.0, %v1039
        %1041 = vdwg.mxu0
        %1042 = vmatpush.msra.mxu0 %v983
        %1043 = vmatpush.msra.mxu0 %v982
        %1044 = vmatpush.msra.mxu0 %v981
        %1045 = vmatpush.msra.mxu0 %v980
        %1046 = vmatpush.msra.mxu0 %v979
        %1047 = vmatpush.msra.mxu0 %v978
        %1048 = vmatpush.msra.mxu0 %v977
        %1049 = vmatpush.msra.mxu0 %v976
        %1050 = vmatpush.msra.mxu0 %v975
        %1051 = vmatpush.msra.mxu0 %v974
        %1052 = vmatpush.msra.mxu0 %v973
        %1053 = vmatpush.msra.mxu0 %v972
        %1054 = vmatpush.msra.mxu0 %v971
        %1055 = vmatpush.msra.mxu0 %v970
        %1056 = vmatpush.msra.mxu0 %v969
        %1057 = vmatpush.msra.mxu0 %v968
        %1058 = vmatmul.f32.gmra.mxu0 %v713
        %v1059 = vpop.f32.mrf.mxu0
        %v1060 = vadd.f32 %v1019, %v1059
        %1061 = vmatmul.f32.gmra.mxu0 %v714
        %v1062 = vpop.f32.mrf.mxu0
        %v1063 = vadd.f32 %v1022, %v1062
        %1064 = vmatmul.f32.gmra.mxu0 %v715
        %v1065 = vpop.f32.mrf.mxu0
        %v1066 = vadd.f32 %v1025, %v1065
        %1067 = vmatmul.f32.gmra.mxu0 %v716
        %v1068 = vpop.f32.mrf.mxu0
        %v1069 = vadd.f32 %v1028, %v1068
        %1070 = vmatmul.f32.gmra.mxu0 %v717
        %v1071 = vpop.f32.mrf.mxu0
        %v1072 = vadd.f32 %v1031, %v1071
        %1073 = vmatmul.f32.gmra.mxu0 %v718
        %v1074 = vpop.f32.mrf.mxu0
        %v1075 = vadd.f32 %v1034, %v1074
        %1076 = vmatmul.f32.gmra.mxu0 %v719
        %v1077 = vpop.f32.mrf.mxu0
        %v1078 = vadd.f32 %v1037, %v1077
        %1079 = vmatmul.f32.gmra.mxu0 %v720
        %v1080 = vpop.f32.mrf.mxu0
        %v1081 = vadd.f32 %v1040, %v1080
        %1082 = vdwg.mxu0
        %s1083 = scalar_lea.vmem [#allocation7], 640
        %v1084 = vld [vmem:[%s1083] sm:$0xff]
        %v1085 = vld [vmem:[%s1083 + $0x8] sm:$0xff]
        %v1086 = vld [vmem:[%s1083 + $0x10] sm:$0xff]
        %v1087 = vld [vmem:[%s1083 + $0x18] sm:$0xff]
        %v1088 = vld [vmem:[%s1083 + $0x20] sm:$0xff]
        %v1089 = vld [vmem:[%s1083 + $0x28] sm:$0xff]
        %v1090 = vld [vmem:[%s1083 + $0x30] sm:$0xff]
        %v1091 = vld [vmem:[%s1083 + $0x38] sm:$0xff]
        %v1092 = vld [vmem:[%s1083 + $0x40] sm:$0xff]
        %v1093 = vld [vmem:[%s1083 + $0x48] sm:$0xff]
        %v1094 = vld [vmem:[%s1083 + $0x50] sm:$0xff]
        %v1095 = vld [vmem:[%s1083 + $0x58] sm:$0xff]
        %v1096 = vld [vmem:[%s1083 + $0x60] sm:$0xff]
        %v1097 = vld [vmem:[%s1083 + $0x68] sm:$0xff]
        %v1098 = vld [vmem:[%s1083 + $0x70] sm:$0xff]
        %v1099 = vld [vmem:[%s1083 + $0x78] sm:$0xff]
        %1100 = vmatpush.msra.mxu0 %v1099
        %1101 = vmatpush.msra.mxu0 %v1098
        %1102 = vmatpush.msra.mxu0 %v1097
        %1103 = vmatpush.msra.mxu0 %v1096
        %1104 = vmatpush.msra.mxu0 %v1095
        %1105 = vmatpush.msra.mxu0 %v1094
        %1106 = vmatpush.msra.mxu0 %v1093
        %1107 = vmatpush.msra.mxu0 %v1092
        %1108 = vmatpush.msra.mxu0 %v1091
        %1109 = vmatpush.msra.mxu0 %v1090
        %1110 = vmatpush.msra.mxu0 %v1089
        %1111 = vmatpush.msra.mxu0 %v1088
        %1112 = vmatpush.msra.mxu0 %v1087
        %1113 = vmatpush.msra.mxu0 %v1086
        %1114 = vmatpush.msra.mxu0 %v1085
        %1115 = vmatpush.msra.mxu0 %v1084
        %1116 = vmatmul.f32.gmra.mxu0 %v754
        %v1117 = vpop.f32.mrf.mxu0
        %v1118 = vadd.f32 0.0, %v1117
        %1119 = vmatmul.f32.gmra.mxu0 %v755
        %v1120 = vpop.f32.mrf.mxu0
        %v1121 = vadd.f32 0.0, %v1120
        %1122 = vmatmul.f32.gmra.mxu0 %v756
        %v1123 = vpop.f32.mrf.mxu0
        %v1124 = vadd.f32 0.0, %v1123
        %1125 = vmatmul.f32.gmra.mxu0 %v757
        %v1126 = vpop.f32.mrf.mxu0
        %v1127 = vadd.f32 0.0, %v1126
        %1128 = vmatmul.f32.gmra.mxu0 %v758
        %v1129 = vpop.f32.mrf.mxu0
        %v1130 = vadd.f32 0.0, %v1129
        %1131 = vmatmul.f32.gmra.mxu0 %v759
        %v1132 = vpop.f32.mrf.mxu0
        %v1133 = vadd.f32 0.0, %v1132
        %1134 = vmatmul.f32.gmra.mxu0 %v760
        %v1135 = vpop.f32.mrf.mxu0
        %v1136 = vadd.f32 0.0, %v1135
        %1137 = vmatmul.f32.gmra.mxu0 %v761
        %v1138 = vpop.f32.mrf.mxu0
        %v1139 = vadd.f32 0.0, %v1138
        %1140 = vdwg.mxu0
        %v1141 = vadd.f32 %v1060, %v1118
        %v1142 = vadd.f32 %v1063, %v1121
        %v1143 = vadd.f32 %v1066, %v1124
        %v1144 = vadd.f32 %v1069, %v1127
        %v1145 = vadd.f32 %v1072, %v1130
        %v1146 = vadd.f32 %v1075, %v1133
        %v1147 = vadd.f32 %v1078, %v1136
        %v1148 = vadd.f32 %v1081, %v1139
        %v1149 = vadd.f32 %v959, %v1141
        %v1150 = vadd.f32 %v960, %v1142
        %v1151 = vadd.f32 %v961, %v1143
        %v1152 = vadd.f32 %v962, %v1144
        %v1153 = vadd.f32 %v963, %v1145
        %v1154 = vadd.f32 %v964, %v1146
        %v1155 = vadd.f32 %v965, %v1147
        %v1156 = vadd.f32 %v966, %v1148
        %s1157 = scalar_lea.vmem [#allocation7], 768
        %v1158 = vld [vmem:[%s1157] sm:$0xff]
        %v1159 = vld [vmem:[%s1157 + $0x8] sm:$0xff]
        %v1160 = vld [vmem:[%s1157 + $0x10] sm:$0xff]
        %v1161 = vld [vmem:[%s1157 + $0x18] sm:$0xff]
        %v1162 = vld [vmem:[%s1157 + $0x20] sm:$0xff]
        %v1163 = vld [vmem:[%s1157 + $0x28] sm:$0xff]
        %v1164 = vld [vmem:[%s1157 + $0x30] sm:$0xff]
        %v1165 = vld [vmem:[%s1157 + $0x38] sm:$0xff]
        %v1166 = vld [vmem:[%s1157 + $0x40] sm:$0xff]
        %v1167 = vld [vmem:[%s1157 + $0x48] sm:$0xff]
        %v1168 = vld [vmem:[%s1157 + $0x50] sm:$0xff]
        %v1169 = vld [vmem:[%s1157 + $0x58] sm:$0xff]
        %v1170 = vld [vmem:[%s1157 + $0x60] sm:$0xff]
        %v1171 = vld [vmem:[%s1157 + $0x68] sm:$0xff]
        %v1172 = vld [vmem:[%s1157 + $0x70] sm:$0xff]
        %v1173 = vld [vmem:[%s1157 + $0x78] sm:$0xff]
        %s1174 = scalar_lea.vmem [#allocation7], 896
        %v1175 = vld [vmem:[%s1174] sm:$0xff]
        %v1176 = vld [vmem:[%s1174 + $0x8] sm:$0xff]
        %v1177 = vld [vmem:[%s1174 + $0x10] sm:$0xff]
        %v1178 = vld [vmem:[%s1174 + $0x18] sm:$0xff]
        %v1179 = vld [vmem:[%s1174 + $0x20] sm:$0xff]
        %v1180 = vld [vmem:[%s1174 + $0x28] sm:$0xff]
        %v1181 = vld [vmem:[%s1174 + $0x30] sm:$0xff]
        %v1182 = vld [vmem:[%s1174 + $0x38] sm:$0xff]
        %v1183 = vld [vmem:[%s1174 + $0x40] sm:$0xff]
        %v1184 = vld [vmem:[%s1174 + $0x48] sm:$0xff]
        %v1185 = vld [vmem:[%s1174 + $0x50] sm:$0xff]
        %v1186 = vld [vmem:[%s1174 + $0x58] sm:$0xff]
        %v1187 = vld [vmem:[%s1174 + $0x60] sm:$0xff]
        %v1188 = vld [vmem:[%s1174 + $0x68] sm:$0xff]
        %v1189 = vld [vmem:[%s1174 + $0x70] sm:$0xff]
        %v1190 = vld [vmem:[%s1174 + $0x78] sm:$0xff]
        %1191 = vmatpush.msra.mxu0 %v1190
        %1192 = vmatpush.msra.mxu0 %v1189
        %1193 = vmatpush.msra.mxu0 %v1188
        %1194 = vmatpush.msra.mxu0 %v1187
        %1195 = vmatpush.msra.mxu0 %v1186
        %1196 = vmatpush.msra.mxu0 %v1185
        %1197 = vmatpush.msra.mxu0 %v1184
        %1198 = vmatpush.msra.mxu0 %v1183
        %1199 = vmatpush.msra.mxu0 %v1182
        %1200 = vmatpush.msra.mxu0 %v1181
        %1201 = vmatpush.msra.mxu0 %v1180
        %1202 = vmatpush.msra.mxu0 %v1179
        %1203 = vmatpush.msra.mxu0 %v1178
        %1204 = vmatpush.msra.mxu0 %v1177
        %1205 = vmatpush.msra.mxu0 %v1176
        %1206 = vmatpush.msra.mxu0 %v1175
        %1207 = vmatmul.f32.gmra.mxu0 %v603
        %v1208 = vpop.f32.mrf.mxu0
        %v1209 = vadd.f32 0.0, %v1208
        %1210 = vmatmul.f32.gmra.mxu0 %v604
        %v1211 = vpop.f32.mrf.mxu0
        %v1212 = vadd.f32 0.0, %v1211
        %1213 = vmatmul.f32.gmra.mxu0 %v605
        %v1214 = vpop.f32.mrf.mxu0
        %v1215 = vadd.f32 0.0, %v1214
        %1216 = vmatmul.f32.gmra.mxu0 %v606
        %v1217 = vpop.f32.mrf.mxu0
        %v1218 = vadd.f32 0.0, %v1217
        %1219 = vmatmul.f32.gmra.mxu0 %v607
        %v1220 = vpop.f32.mrf.mxu0
        %v1221 = vadd.f32 0.0, %v1220
        %1222 = vmatmul.f32.gmra.mxu0 %v608
        %v1223 = vpop.f32.mrf.mxu0
        %v1224 = vadd.f32 0.0, %v1223
        %1225 = vmatmul.f32.gmra.mxu0 %v609
        %v1226 = vpop.f32.mrf.mxu0
        %v1227 = vadd.f32 0.0, %v1226
        %1228 = vmatmul.f32.gmra.mxu0 %v610
        %v1229 = vpop.f32.mrf.mxu0
        %v1230 = vadd.f32 0.0, %v1229
        %1231 = vdwg.mxu0
        %1232 = vmatpush.msra.mxu0 %v1173
        %1233 = vmatpush.msra.mxu0 %v1172
        %1234 = vmatpush.msra.mxu0 %v1171
        %1235 = vmatpush.msra.mxu0 %v1170
        %1236 = vmatpush.msra.mxu0 %v1169
        %1237 = vmatpush.msra.mxu0 %v1168
        %1238 = vmatpush.msra.mxu0 %v1167
        %1239 = vmatpush.msra.mxu0 %v1166
        %1240 = vmatpush.msra.mxu0 %v1165
        %1241 = vmatpush.msra.mxu0 %v1164
        %1242 = vmatpush.msra.mxu0 %v1163
        %1243 = vmatpush.msra.mxu0 %v1162
        %1244 = vmatpush.msra.mxu0 %v1161
        %1245 = vmatpush.msra.mxu0 %v1160
        %1246 = vmatpush.msra.mxu0 %v1159
        %1247 = vmatpush.msra.mxu0 %v1158
        %1248 = vmatmul.f32.gmra.mxu0 %v713
        %v1249 = vpop.f32.mrf.mxu0
        %v1250 = vadd.f32 %v1209, %v1249
        %1251 = vmatmul.f32.gmra.mxu0 %v714
        %v1252 = vpop.f32.mrf.mxu0
        %v1253 = vadd.f32 %v1212, %v1252
        %1254 = vmatmul.f32.gmra.mxu0 %v715
        %v1255 = vpop.f32.mrf.mxu0
        %v1256 = vadd.f32 %v1215, %v1255
        %1257 = vmatmul.f32.gmra.mxu0 %v716
        %v1258 = vpop.f32.mrf.mxu0
        %v1259 = vadd.f32 %v1218, %v1258
        %1260 = vmatmul.f32.gmra.mxu0 %v717
        %v1261 = vpop.f32.mrf.mxu0
        %v1262 = vadd.f32 %v1221, %v1261
        %1263 = vmatmul.f32.gmra.mxu0 %v718
        %v1264 = vpop.f32.mrf.mxu0
        %v1265 = vadd.f32 %v1224, %v1264
        %1266 = vmatmul.f32.gmra.mxu0 %v719
        %v1267 = vpop.f32.mrf.mxu0
        %v1268 = vadd.f32 %v1227, %v1267
        %1269 = vmatmul.f32.gmra.mxu0 %v720
        %v1270 = vpop.f32.mrf.mxu0
        %v1271 = vadd.f32 %v1230, %v1270
        %1272 = vdwg.mxu0
        %s1273 = scalar_lea.vmem [#allocation7], 1024
        %v1274 = vld [vmem:[%s1273] sm:$0xff]
        %v1275 = vld [vmem:[%s1273 + $0x8] sm:$0xff]
        %v1276 = vld [vmem:[%s1273 + $0x10] sm:$0xff]
        %v1277 = vld [vmem:[%s1273 + $0x18] sm:$0xff]
        %v1278 = vld [vmem:[%s1273 + $0x20] sm:$0xff]
        %v1279 = vld [vmem:[%s1273 + $0x28] sm:$0xff]
        %v1280 = vld [vmem:[%s1273 + $0x30] sm:$0xff]
        %v1281 = vld [vmem:[%s1273 + $0x38] sm:$0xff]
        %v1282 = vld [vmem:[%s1273 + $0x40] sm:$0xff]
        %v1283 = vld [vmem:[%s1273 + $0x48] sm:$0xff]
        %v1284 = vld [vmem:[%s1273 + $0x50] sm:$0xff]
        %v1285 = vld [vmem:[%s1273 + $0x58] sm:$0xff]
        %v1286 = vld [vmem:[%s1273 + $0x60] sm:$0xff]
        %v1287 = vld [vmem:[%s1273 + $0x68] sm:$0xff]
        %v1288 = vld [vmem:[%s1273 + $0x70] sm:$0xff]
        %v1289 = vld [vmem:[%s1273 + $0x78] sm:$0xff]
        %1290 = vmatpush.msra.mxu0 %v1289
        %1291 = vmatpush.msra.mxu0 %v1288
        %1292 = vmatpush.msra.mxu0 %v1287
        %1293 = vmatpush.msra.mxu0 %v1286
        %1294 = vmatpush.msra.mxu0 %v1285
        %1295 = vmatpush.msra.mxu0 %v1284
        %1296 = vmatpush.msra.mxu0 %v1283
        %1297 = vmatpush.msra.mxu0 %v1282
        %1298 = vmatpush.msra.mxu0 %v1281
        %1299 = vmatpush.msra.mxu0 %v1280
        %1300 = vmatpush.msra.mxu0 %v1279
        %1301 = vmatpush.msra.mxu0 %v1278
        %1302 = vmatpush.msra.mxu0 %v1277
        %1303 = vmatpush.msra.mxu0 %v1276
        %1304 = vmatpush.msra.mxu0 %v1275
        %1305 = vmatpush.msra.mxu0 %v1274
        %1306 = vmatmul.f32.gmra.mxu0 %v754
        %v1307 = vpop.f32.mrf.mxu0
        %v1308 = vadd.f32 0.0, %v1307
        %1309 = vmatmul.f32.gmra.mxu0 %v755
        %v1310 = vpop.f32.mrf.mxu0
        %v1311 = vadd.f32 0.0, %v1310
        %1312 = vmatmul.f32.gmra.mxu0 %v756
        %v1313 = vpop.f32.mrf.mxu0
        %v1314 = vadd.f32 0.0, %v1313
        %1315 = vmatmul.f32.gmra.mxu0 %v757
        %v1316 = vpop.f32.mrf.mxu0
        %v1317 = vadd.f32 0.0, %v1316
        %1318 = vmatmul.f32.gmra.mxu0 %v758
        %v1319 = vpop.f32.mrf.mxu0
        %v1320 = vadd.f32 0.0, %v1319
        %1321 = vmatmul.f32.gmra.mxu0 %v759
        %v1322 = vpop.f32.mrf.mxu0
        %v1323 = vadd.f32 0.0, %v1322
        %1324 = vmatmul.f32.gmra.mxu0 %v760
        %v1325 = vpop.f32.mrf.mxu0
        %v1326 = vadd.f32 0.0, %v1325
        %1327 = vmatmul.f32.gmra.mxu0 %v761
        %v1328 = vpop.f32.mrf.mxu0
        %v1329 = vadd.f32 0.0, %v1328
        %1330 = vdwg.mxu0
        %v1331 = vadd.f32 %v1250, %v1308
        %v1332 = vadd.f32 %v1253, %v1311
        %v1333 = vadd.f32 %v1256, %v1314
        %v1334 = vadd.f32 %v1259, %v1317
        %v1335 = vadd.f32 %v1262, %v1320
        %v1336 = vadd.f32 %v1265, %v1323
        %v1337 = vadd.f32 %v1268, %v1326
        %v1338 = vadd.f32 %v1271, %v1329
        %v1339 = vsel %vm672, 1, 0
        %v1340 = vsel %vm673, 1, 0
        %v1341 = vsel %vm674, 1, 0
        %v1342 = vsel %vm675, 1, 0
        %v1343 = vsel %vm676, 1, 0
        %v1344 = vsel %vm677, 1, 0
        %v1345 = vsel %vm678, 1, 0
        %v1346 = vsel %vm679, 1, 0
        %vm1347 = vcmp.eq.s32.totalorder %v1339, 1
        %vm1348 = vcmp.eq.s32.totalorder %v1340, 1
        %vm1349 = vcmp.eq.s32.totalorder %v1341, 1
        %vm1350 = vcmp.eq.s32.totalorder %v1342, 1
        %vm1351 = vcmp.eq.s32.totalorder %v1343, 1
        %vm1352 = vcmp.eq.s32.totalorder %v1344, 1
        %vm1353 = vcmp.eq.s32.totalorder %v1345, 1
        %vm1354 = vcmp.eq.s32.totalorder %v1346, 1
        %v1355 = vsel %vm1347, %v1332, 0.0
        %v1356 = vsel %vm1348, %v1333, 0.0
        %v1357 = vsel %vm1349, %v1334, 0.0
        %v1358 = vsel %vm1350, %v1335, 0.0
        %v1359 = vsel %vm1351, %v1336, 0.0
        %v1360 = vsel %vm1352, %v1337, 0.0
        %v1361 = vsel %vm1353, %v1338, 0.0
        %v1362 = vsel %vm1354, %v1331, 0.0
        %v1363 = vadd.f32 %v1149, %v1355
        %v1364 = vadd.f32 %v1150, %v1356
        %v1365 = vadd.f32 %v1151, %v1357
        %v1366 = vadd.f32 %v1152, %v1358
        %v1367 = vadd.f32 %v1153, %v1359
        %v1368 = vadd.f32 %v1154, %v1360
        %v1369 = vadd.f32 %v1155, %v1361
        %v1370 = vadd.f32 %v1156, %v1362
        %v1371 = vld [vmem:[%s5] sm:$0x1]
        %v1373 = vperm.slane %v1371, 0
        %v1375 = vmul.f32 %v1363, %v1373
        %v1376 = vmul.f32 %v1364, %v1373
        %v1377 = vmul.f32 %v1365, %v1373
        %v1378 = vmul.f32 %v1366, %v1373
        %v1379 = vmul.f32 %v1367, %v1373
        %v1380 = vmul.f32 %v1368, %v1373
        %v1381 = vmul.f32 %v1369, %v1373
        %v1382 = vmul.f32 %v1370, %v1373
        %v1383 = vld [vmem:[%s6] sm:$0x1]
        %v1385 = vperm.slane %v1383, 0
        %v1387 = vadd.f32 %v1375, %v1385
        %v1388 = vadd.f32 %v1376, %v1385
        %v1389 = vadd.f32 %v1377, %v1385
        %v1390 = vadd.f32 %v1378, %v1385
        %v1391 = vadd.f32 %v1379, %v1385
        %v1392 = vadd.f32 %v1380, %v1385
        %v1393 = vadd.f32 %v1381, %v1385
        %v1394 = vadd.f32 %v1382, %v1385
        %v1395 = vmax.f32 %v1387, 0.0
        %v1396 = vmax.f32 %v1388, 0.0
        %v1397 = vmax.f32 %v1389, 0.0
        %v1398 = vmax.f32 %v1390, 0.0
        %v1399 = vmax.f32 %v1391, 0.0
        %v1400 = vmax.f32 %v1392, 0.0
        %v1401 = vmax.f32 %v1393, 0.0
        %v1402 = vmax.f32 %v1394, 0.0
        %v1403 = vld [vmem:[#allocation8] sm:$0xff]
        %v1404 = vld [vmem:[#allocation8 + $0x8] sm:$0xff]
        %v1405 = vld [vmem:[#allocation8 + $0x10] sm:$0xff]
        %v1406 = vld [vmem:[#allocation8 + $0x18] sm:$0xff]
        %v1407 = vld [vmem:[#allocation8 + $0x20] sm:$0xff]
        %v1408 = vld [vmem:[#allocation8 + $0x28] sm:$0xff]
        %v1409 = vld [vmem:[#allocation8 + $0x30] sm:$0xff]
        %v1410 = vld [vmem:[#allocation8 + $0x38] sm:$0xff]
        %v1411 = vld [vmem:[#allocation8 + $0x40] sm:$0xff]
        %v1412 = vld [vmem:[#allocation8 + $0x48] sm:$0xff]
        %v1413 = vld [vmem:[#allocation8 + $0x50] sm:$0xff]
        %v1414 = vld [vmem:[#allocation8 + $0x58] sm:$0xff]
        %v1415 = vld [vmem:[#allocation8 + $0x60] sm:$0xff]
        %v1416 = vld [vmem:[#allocation8 + $0x68] sm:$0xff]
        %v1417 = vld [vmem:[#allocation8 + $0x70] sm:$0xff]
        %v1418 = vld [vmem:[#allocation8 + $0x78] sm:$0xff]
        %1419 = vmatpush.msra.mxu0 %v1418
        %1420 = vmatpush.msra.mxu0 %v1417
        %1421 = vmatpush.msra.mxu0 %v1416
        %1422 = vmatpush.msra.mxu0 %v1415
        %1423 = vmatpush.msra.mxu0 %v1414
        %1424 = vmatpush.msra.mxu0 %v1413
        %1425 = vmatpush.msra.mxu0 %v1412
        %1426 = vmatpush.msra.mxu0 %v1411
        %1427 = vmatpush.msra.mxu0 %v1410
        %1428 = vmatpush.msra.mxu0 %v1409
        %1429 = vmatpush.msra.mxu0 %v1408
        %1430 = vmatpush.msra.mxu0 %v1407
        %1431 = vmatpush.msra.mxu0 %v1406
        %1432 = vmatpush.msra.mxu0 %v1405
        %1433 = vmatpush.msra.mxu0 %v1404
        %1434 = vmatpush.msra.mxu0 %v1403
        %1435 = vmatmul.f32.gmra.mxu0 %v1395
        %v1436 = vpop.f32.mrf.mxu0
        %v1437 = vadd.f32 0.0, %v1436
        %1438 = vmatmul.f32.gmra.mxu0 %v1396
        %v1439 = vpop.f32.mrf.mxu0
        %v1440 = vadd.f32 0.0, %v1439
        %1441 = vmatmul.f32.gmra.mxu0 %v1397
        %v1442 = vpop.f32.mrf.mxu0
        %v1443 = vadd.f32 0.0, %v1442
        %1444 = vmatmul.f32.gmra.mxu0 %v1398
        %v1445 = vpop.f32.mrf.mxu0
        %v1446 = vadd.f32 0.0, %v1445
        %1447 = vmatmul.f32.gmra.mxu0 %v1399
        %v1448 = vpop.f32.mrf.mxu0
        %v1449 = vadd.f32 0.0, %v1448
        %1450 = vmatmul.f32.gmra.mxu0 %v1400
        %v1451 = vpop.f32.mrf.mxu0
        %v1452 = vadd.f32 0.0, %v1451
        %1453 = vmatmul.f32.gmra.mxu0 %v1401
        %v1454 = vpop.f32.mrf.mxu0
        %v1455 = vadd.f32 0.0, %v1454
        %1456 = vmatmul.f32.gmra.mxu0 %v1402
        %v1457 = vpop.f32.mrf.mxu0
        %v1458 = vadd.f32 0.0, %v1457
        %1459 = vdwg.mxu0
        %v1460 = vld [vmem:[%s8] sm:$0x1]
        %v1462 = vperm.slane %v1460, 0
        %v1464 = vmul.f32 %v1437, %v1462
        %v1465 = vmul.f32 %v1440, %v1462
        %v1466 = vmul.f32 %v1443, %v1462
        %v1467 = vmul.f32 %v1446, %v1462
        %v1468 = vmul.f32 %v1449, %v1462
        %v1469 = vmul.f32 %v1452, %v1462
        %v1470 = vmul.f32 %v1455, %v1462
        %v1471 = vmul.f32 %v1458, %v1462
        %v1472 = vld [vmem:[%s9] sm:$0x1]
        %v1474 = vperm.slane %v1472, 0
        %v1476 = vadd.f32 %v1464, %v1474
        %v1477 = vadd.f32 %v1465, %v1474
        %v1478 = vadd.f32 %v1466, %v1474
        %v1479 = vadd.f32 %v1467, %v1474
        %v1480 = vadd.f32 %v1468, %v1474
        %v1481 = vadd.f32 %v1469, %v1474
        %v1482 = vadd.f32 %v1470, %v1474
        %v1483 = vadd.f32 %v1471, %v1474
        %v1484 = vadd.f32 %v1476, %v615
        %v1485 = vadd.f32 %v1477, %v616
        %v1486 = vadd.f32 %v1478, %v617
        %v1487 = vadd.f32 %v1479, %v618
        %v1488 = vadd.f32 %v1480, %v619
        %v1489 = vadd.f32 %v1481, %v620
        %v1490 = vadd.f32 %v1482, %v621
        %v1491 = vadd.f32 %v1483, %v622
        %v1492 = vmax.f32 %v1484, 0.0
        %v1493 = vmax.f32 %v1485, 0.0
        %v1494 = vmax.f32 %v1486, 0.0
        %v1495 = vmax.f32 %v1487, 0.0
        %v1496 = vmax.f32 %v1488, 0.0
        %v1497 = vmax.f32 %v1489, 0.0
        %v1498 = vmax.f32 %v1490, 0.0
        %v1499 = vmax.f32 %v1491, 0.0
        %1500 = vst [vmem:[%s456] sm:$0xff] %v1492
        %1501 = vst [vmem:[%s456 + $0x8] sm:$0xff] %v1493
        %1502 = vst [vmem:[%s456 + $0x10] sm:$0xff] %v1494
        %1503 = vst [vmem:[%s456 + $0x18] sm:$0xff] %v1495
        %1504 = vst [vmem:[%s456 + $0x20] sm:$0xff] %v1496
        %1505 = vst [vmem:[%s456 + $0x28] sm:$0xff] %v1497
        %1506 = vst [vmem:[%s456 + $0x30] sm:$0xff] %v1498
        %1507 = vst [vmem:[%s456 + $0x38] sm:$0xff] %v1499
        %s1508 = sand.u32 %s274, 1
        %s1509 = scalar_lea.sflag [#allocation4], %s1508
        %s1510 = sand.u32 %s274, 1
        %s1511 = smul.addr %s1510, 64
        %s1512 = scalar_lea.vmem [#allocation10], %s1511
        // Predicated region
        $region81: #{tpu_custom_call.1} parent=63 // pred_check
          %p1513 = pneg %p284
        $region82: #{tpu_custom_call.1} parent=63 // pred_check_branch
          %1515 = sbr.rel (%p1513) target = $region84
        $region83: #{tpu_custom_call.1} parent=63 // pred_region
          %1517 = vsyncadd %s1509, 0
          %s1518 = smul.addr %s30, 8
          %s1519 = smul.addr %s1518, 8
          %s1520 = scalar_lea.hbm %s11, %s1519
          %s1521 = sshll.u32 %s1512, 4
          %s1522 = int_to_ptr.vmem [resolvable:$true] %s1521
          %s1523 = sshll.u32 %s1520, 4
          %s1524 = int_to_ptr.hbm [resolvable:$true] %s1523
          %1529 = dma.vmem_to_hbm [thread:$0]  %s1522, 1024, %s1524, %s1509, 128, 128, 8
        $region84: #{tpu_custom_call.1} parent=63 // pred_fallthru
          _
      $region64: #{tpu_custom_call.1} parent=5 // pred_fallthru
        _
      %p1530 = scmp.le.s32.totalorder 2, %s25
      // Predicated region
      $region85: #{tpu_custom_call.1} parent=5 // pred_check
        %p1531 = pneg %p1530
      $region86: #{tpu_custom_call.1} parent=5 // pred_check_branch
        %1533 = sbr.rel (%p1531) target = $region88
      $region87: #{tpu_custom_call.1} parent=5 // pred_region
        %s1534 = ssub.s32 %s25, 2
        // Predicated region
        $region89: #{tpu_custom_call.1} parent=87 // pred_check
          %p1535 = pneg %p290
        $region90: #{tpu_custom_call.1} parent=87 // pred_check_branch
          %1537 = sbr.rel (%p1535) target = $region92
        $region91: #{tpu_custom_call.1} parent=87 // pred_region
          %s1538 = sand.u32 %s275, 1
          %s1539 = scalar_lea.sflag [#allocation4], %s1538
          %s1540 = sand.u32 %s275, 1
          %s1541 = smul.addr %s1540, 64
          %s1542 = scalar_lea.vmem [#allocation10], %s1541
          %1544 = dma.done %s1539, 1024
        $region92: #{tpu_custom_call.1} parent=87 // pred_fallthru
          _
      $region88: #{tpu_custom_call.1} parent=5 // pred_fallthru
        _
    $region6: #{tpu_custom_call.1} parent=1 // loop_footer
      %s29 = sadd.s32 1, %s25
    $region7: #{tpu_custom_call.1} parent=1 // loop_footer_branch
      %24 = sbr.rel target = $region3
    $region8: #{tpu_custom_call.1} parent=1 // loop_exit
      _
    %1545 = vsyncpa [#allocation3], 1
    %s1546 = scalar_lea.sflag [#allocation3], 1
    %1547 = vsyncpa %s1546, 1
    %1548 = vsyncpa [#allocation6], 1
    %1549 = vsyncpa [#allocation9], 1
    %1550 = vsyncpa [#allocation4], 1
    %s1551 = scalar_lea.sflag [#allocation4], 1
    %1552 = vsyncpa %s1551, 1

</llo_original>
